<compile_context>
chip_gen: v7x
topology: tpu7x:2x2x1
jax: 0.10.0
libtpu: 0.0.40
codegen_flags: <defaults>
</compile_context>

<pallas_src>
import math

import jax
import jax.numpy as jnp
from jax import lax
from jax.experimental import pallas as pl
from jax.experimental.pallas import tpu as pltpu


def _make_self_attn_kernel(B, S, F, H):
    d = F // H
    scale = 1.0 / math.sqrt(d)

    def kernel(x_ref, w_ref, b_ref, o_ref):
        # x_ref : (B*S, F)   all batch rows, flattened
        # w_ref : (F, 3F)    fused [Wq^T | Wk^T | Wv^T]
        # b_ref : (1, 3F)    fused [bq | bk | bv]
        # o_ref : (B, H*d)   mean-over-sequence context, lane-dense
        x = x_ref[...]
        w = w_ref[...]
        bias = b_ref[...]

        # Single fused QKV projection for every (batch, seq) row.
        qkv = jnp.dot(x, w, preferred_element_type=jnp.float32) + bias  # (B*S, 3F)

        rows = []
        for b in range(B):                       # static unroll, B is tiny
            blk = qkv[b * S:(b + 1) * S, :]      # (S, 3F)
            head_ctx = []
            for h in range(H):                   # static unroll, H is tiny
                q = blk[:, h * d:(h + 1) * d]                    # (S, d)
                k = blk[:, F + h * d:F + (h + 1) * d]            # (S, d)
                v = blk[:, 2 * F + h * d:2 * F + (h + 1) * d]    # (S, d)

                # scores: contract over d directly (no k.T materialization)
                s = lax.dot_general(
                    q, k, (((1,), (1,)), ((), ())),
                    preferred_element_type=jnp.float32) * scale  # (S, S)

                s = s - jnp.max(s, axis=-1, keepdims=True)
                p = jnp.exp(s)
                p = p / jnp.sum(p, axis=-1, keepdims=True)       # softmax (S, S)

                # fold the mean over query positions into the PV matmul:
                # mean_q (P @ V) == (mean_q P) @ V
                p_mean = jnp.mean(p, axis=0, keepdims=True)      # (1, S)
                head_ctx.append(
                    jnp.dot(p_mean, v, preferred_element_type=jnp.float32))  # (1, d)

            rows.append(jnp.concatenate(head_ctx, axis=-1))      # (1, H*d)

        o_ref[...] = jnp.concatenate(rows, axis=0)               # (B, H*d)

    return kernel


def self_attention_pallas(x, wq, wk, wv, bq, bk, bv, num_heads):
    """x: (B, S, F); wq/wk/wv: (F, F) torch Linear layout (out, in); b*: (F,)."""
    B, S, F = x.shape
    H = num_heads
    d = F // H

    # Glue (plain JAX): fuse QKV into one RHS / one bias; flatten batch*seq.
    # torch Linear computes y = x @ W.T + b, so concatenate the transposed weights.
    w_qkv = jnp.concatenate([wq.T, wk.T, wv.T], axis=1)          # (F, 3F)
    b_qkv = jnp.concatenate([bq, bk, bv]).reshape(1, 3 * F)      # (1, 3F)
    x2d = x.reshape(B * S, F)                                    # (B*S, F)

    kernel = _make_self_attn_kernel(B, S, F, H)

    # Single grid point: whole problem resident in VMEM, one DMA per operand.
    # TODO(synk): for large S/F, tile x along S and re-derive blocks against
    # v7x's 64 MiB VMEM; keep a "parallel" batch axis for its 2 TensorCores.
    out = pl.pallas_call(
        kernel,
        out_shape=jax.ShapeDtypeStruct((B, H * d), jnp.float32),
        grid_spec=pltpu.PrefetchScalarGridSpec(
            num_scalar_prefetch=0,
            grid=(1,),
            in_specs=[
                pl.BlockSpec((B * S, F), lambda i: (0, 0)),
                pl.BlockSpec((F, 3 * F), lambda i: (0, 0)),
                pl.BlockSpec((1, 3 * F), lambda i: (0, 0)),
            ],
            out_specs=pl.BlockSpec((B, H * d), lambda i: (0, 0)),
        ),
        compiler_params=pltpu.CompilerParams(
            dimension_semantics=("arbitrary",)),
    )(x2d, w_qkv, b_qkv)

    return out  # (B, all_head_size) == torch.mean(context_layer, dim=1)


def self_attention_ref(x, wq, wk, wv, bq, bk, bv, num_heads):
    """Pure-JAX reference mirroring the PyTorch forward exactly."""
    B, S, F = x.shape
    H = num_heads
    d = F // H
    q = x @ wq.T + bq
    k = x @ wk.T + bk
    v = x @ wv.T + bv

    def t(z):
        return z.reshape(B, S, H, d).transpose(0, 2, 1, 3)

    q, k, v = t(q), t(k), t(v)
    scores = jnp.einsum('bhqd,bhkd->bhqk', q, k) / math.sqrt(d)
    probs = jax.nn.softmax(scores, axis=-1)
    ctx = jnp.einsum('bhqk,bhkd->bhqd', probs, v)
    ctx = ctx.transpose(0, 2, 1, 3).reshape(B, S, H * d)
    return jnp.mean(ctx, axis=1)


if __name__ == "__main__":
    # Small shapes consistent with the module: in_features=32, head_numbers=4.
    B, S, F, H = 2, 8, 32, 4

    key = jax.random.PRNGKey(0)
    kx, kq, kk, kv, kbq, kbk, kbv = jax.random.split(key, 7)

    x = jax.random.normal(kx, (B, S, F), dtype=jnp.float32)
    # torch.nn.Linear(F, F): weight (F, F), bias (F,) — deterministic init.
    bound = 1.0 / math.sqrt(F)
    wq = jax.random.uniform(kq, (F, F), jnp.float32, -bound, bound)
    wk = jax.random.uniform(kk, (F, F), jnp.float32, -bound, bound)
    wv = jax.random.uniform(kv, (F, F), jnp.float32, -bound, bound)
    bq = jax.random.uniform(kbq, (F,), jnp.float32, -bound, bound)
    bk = jax.random.uniform(kbk, (F,), jnp.float32, -bound, bound)
    bv = jax.random.uniform(kbv, (F,), jnp.float32, -bound, bound)

    out = self_attention_pallas(x, wq, wk, wv, bq, bk, bv, H)
    out = jax.block_until_ready(out)

    ref = self_attention_ref(x, wq, wk, wv, bq, bk, bv, H)
    assert out.shape == (B, F)
    assert jnp.allclose(out, ref, rtol=1e-4, atol=1e-5), "mismatch vs reference"

    print("KERNEL_OK")
</pallas_src>

<mosaic_0001>
module attributes {stable_mosaic.version = 11 : i64} {
  func.func @kernel(%arg0: i32, %arg1: memref<16x32xf32, #tpu.memory_space<vmem>>, %arg2: memref<32x96xf32, #tpu.memory_space<vmem>>, %arg3: memref<1x96xf32, #tpu.memory_space<vmem>>, %arg4: memref<2x32xf32, #tpu.memory_space<vmem>>) attributes {dimension_semantics = [#tpu.dimension_semantics<arbitrary>], iteration_bounds = array<i64: 1>, scalar_prefetch = 0 : i64, scratch_operands = 0 : i64, tpu.core_type = #tpu.core_type<tc>, window_params = [{pipeline_mode = #tpu.pipeline_mode<synchronous>, transform_indices = @transform_0, window_bounds = array<i64: 16, 32>}, {pipeline_mode = #tpu.pipeline_mode<synchronous>, transform_indices = @transform_1, window_bounds = array<i64: 32, 96>}, {pipeline_mode = #tpu.pipeline_mode<synchronous>, transform_indices = @transform_2, window_bounds = array<i64: 1, 96>}, {pipeline_mode = #tpu.pipeline_mode<synchronous>, transform_indices = @transform_3, window_bounds = array<i64: 2, 32>}]} {
    %c0 = arith.constant 0 : index
    %c0_0 = arith.constant 0 : index
    %0 = vector.load %arg1[%c0, %c0_0] : memref<16x32xf32, #tpu.memory_space<vmem>>, vector<16x32xf32>
    %c0_1 = arith.constant 0 : index
    %c0_2 = arith.constant 0 : index
    %1 = vector.load %arg2[%c0_1, %c0_2] : memref<32x96xf32, #tpu.memory_space<vmem>>, vector<32x96xf32>
    %c0_3 = arith.constant 0 : index
    %c0_4 = arith.constant 0 : index
    %2 = vector.load %arg3[%c0_3, %c0_4] : memref<1x96xf32, #tpu.memory_space<vmem>>, vector<1x96xf32>
    %cst = arith.constant dense<0.000000e+00> : vector<16x96xf32>
    %3 = tpu.matmul %0, %1, %cst {dimension_numbers = #tpu.dot_dimension_numbers<[1], [0], [0], [1], [0, 0, 1, 1], [], []>} : vector<16x32xf32>, vector<32x96xf32>, vector<16x96xf32> -> vector<16x96xf32>
    %4 = vector.broadcast %2 : vector<1x96xf32> to vector<16x96xf32>
    %5 = arith.addf %3, %4 : vector<16x96xf32>
    %6 = vector.extract_strided_slice %5 {offsets = [0, 0], sizes = [8, 96], strides = [1, 1]} : vector<16x96xf32> to vector<8x96xf32>
    %7 = vector.extract_strided_slice %6 {offsets = [0, 0], sizes = [8, 8], strides = [1, 1]} : vector<8x96xf32> to vector<8x8xf32>
    %8 = vector.extract_strided_slice %6 {offsets = [0, 32], sizes = [8, 8], strides = [1, 1]} : vector<8x96xf32> to vector<8x8xf32>
    %9 = vector.extract_strided_slice %6 {offsets = [0, 64], sizes = [8, 8], strides = [1, 1]} : vector<8x96xf32> to vector<8x8xf32>
    %cst_5 = arith.constant dense<0.000000e+00> : vector<8x8xf32>
    %10 = tpu.matmul %7, %8, %cst_5 {dimension_numbers = #tpu.dot_dimension_numbers<[1], [1], [0], [0], [0, 0, 1, 0], [], []>} : vector<8x8xf32>, vector<8x8xf32>, vector<8x8xf32> -> vector<8x8xf32>
    %cst_6 = arith.constant 0.353553385 : f32
    %11 = vector.broadcast %cst_6 : f32 to vector<8x8xf32>
    %12 = arith.mulf %10, %11 : vector<8x8xf32>
    %cst_7 = arith.constant dense<0xFF800000> : vector<8xf32>
    %13 = vector.multi_reduction <maximumf>, %12, %cst_7 [1] : vector<8x8xf32> to vector<8xf32>
    %14 = vector.shape_cast %13 : vector<8xf32> to vector<8x1xf32>
    %15 = vector.broadcast %14 : vector<8x1xf32> to vector<8x8xf32>
    %16 = arith.subf %12, %15 : vector<8x8xf32>
    %17 = math.exp %16 : vector<8x8xf32>
    %cst_8 = arith.constant dense<0.000000e+00> : vector<8xf32>
    %18 = vector.multi_reduction <add>, %17, %cst_8 [1] : vector<8x8xf32> to vector<8xf32>
    %19 = vector.shape_cast %18 : vector<8xf32> to vector<8x1xf32>
    %20 = vector.broadcast %19 : vector<8x1xf32> to vector<8x8xf32>
    %21 = arith.divf %17, %20 : vector<8x8xf32>
    %cst_9 = arith.constant dense<0.000000e+00> : vector<8xf32>
    %22 = vector.multi_reduction <add>, %21, %cst_9 [0] : vector<8x8xf32> to vector<8xf32>
    %23 = vector.shape_cast %22 : vector<8xf32> to vector<1x8xf32>
    %cst_10 = arith.constant 8.000000e+00 : f32
    %24 = vector.broadcast %cst_10 : f32 to vector<1x8xf32>
    %25 = arith.divf %23, %24 : vector<1x8xf32>
    %cst_11 = arith.constant dense<0.000000e+00> : vector<1x8xf32>
    %26 = tpu.matmul %25, %9, %cst_11 {dimension_numbers = #tpu.dot_dimension_numbers<[1], [0], [0], [1], [0, 0, 1, 1], [], []>} : vector<1x8xf32>, vector<8x8xf32>, vector<1x8xf32> -> vector<1x8xf32>
    %27 = vector.extract_strided_slice %6 {offsets = [0, 8], sizes = [8, 8], strides = [1, 1]} : vector<8x96xf32> to vector<8x8xf32>
    %28 = vector.extract_strided_slice %6 {offsets = [0, 40], sizes = [8, 8], strides = [1, 1]} : vector<8x96xf32> to vector<8x8xf32>
    %29 = vector.extract_strided_slice %6 {offsets = [0, 72], sizes = [8, 8], strides = [1, 1]} : vector<8x96xf32> to vector<8x8xf32>
    %cst_12 = arith.constant dense<0.000000e+00> : vector<8x8xf32>
    %30 = tpu.matmul %27, %28, %cst_12 {dimension_numbers = #tpu.dot_dimension_numbers<[1], [1], [0], [0], [0, 0, 1, 0], [], []>} : vector<8x8xf32>, vector<8x8xf32>, vector<8x8xf32> -> vector<8x8xf32>
    %cst_13 = arith.constant 0.353553385 : f32
    %31 = vector.broadcast %cst_13 : f32 to vector<8x8xf32>
    %32 = arith.mulf %30, %31 : vector<8x8xf32>
    %cst_14 = arith.constant dense<0xFF800000> : vector<8xf32>
    %33 = vector.multi_reduction <maximumf>, %32, %cst_14 [1] : vector<8x8xf32> to vector<8xf32>
    %34 = vector.shape_cast %33 : vector<8xf32> to vector<8x1xf32>
    %35 = vector.broadcast %34 : vector<8x1xf32> to vector<8x8xf32>
    %36 = arith.subf %32, %35 : vector<8x8xf32>
    %37 = math.exp %36 : vector<8x8xf32>
    %cst_15 = arith.constant dense<0.000000e+00> : vector<8xf32>
    %38 = vector.multi_reduction <add>, %37, %cst_15 [1] : vector<8x8xf32> to vector<8xf32>
    %39 = vector.shape_cast %38 : vector<8xf32> to vector<8x1xf32>
    %40 = vector.broadcast %39 : vector<8x1xf32> to vector<8x8xf32>
    %41 = arith.divf %37, %40 : vector<8x8xf32>
    %cst_16 = arith.constant dense<0.000000e+00> : vector<8xf32>
    %42 = vector.multi_reduction <add>, %41, %cst_16 [0] : vector<8x8xf32> to vector<8xf32>
    %43 = vector.shape_cast %42 : vector<8xf32> to vector<1x8xf32>
    %cst_17 = arith.constant 8.000000e+00 : f32
    %44 = vector.broadcast %cst_17 : f32 to vector<1x8xf32>
    %45 = arith.divf %43, %44 : vector<1x8xf32>
    %cst_18 = arith.constant dense<0.000000e+00> : vector<1x8xf32>
    %46 = tpu.matmul %45, %29, %cst_18 {dimension_numbers = #tpu.dot_dimension_numbers<[1], [0], [0], [1], [0, 0, 1, 1], [], []>} : vector<1x8xf32>, vector<8x8xf32>, vector<1x8xf32> -> vector<1x8xf32>
    %47 = vector.extract_strided_slice %6 {offsets = [0, 16], sizes = [8, 8], strides = [1, 1]} : vector<8x96xf32> to vector<8x8xf32>
    %48 = vector.extract_strided_slice %6 {offsets = [0, 48], sizes = [8, 8], strides = [1, 1]} : vector<8x96xf32> to vector<8x8xf32>
    %49 = vector.extract_strided_slice %6 {offsets = [0, 80], sizes = [8, 8], strides = [1, 1]} : vector<8x96xf32> to vector<8x8xf32>
    %cst_19 = arith.constant dense<0.000000e+00> : vector<8x8xf32>
    %50 = tpu.matmul %47, %48, %cst_19 {dimension_numbers = #tpu.dot_dimension_numbers<[1], [1], [0], [0], [0, 0, 1, 0], [], []>} : vector<8x8xf32>, vector<8x8xf32>, vector<8x8xf32> -> vector<8x8xf32>
    %cst_20 = arith.constant 0.353553385 : f32
    %51 = vector.broadcast %cst_20 : f32 to vector<8x8xf32>
    %52 = arith.mulf %50, %51 : vector<8x8xf32>
    %cst_21 = arith.constant dense<0xFF800000> : vector<8xf32>
    %53 = vector.multi_reduction <maximumf>, %52, %cst_21 [1] : vector<8x8xf32> to vector<8xf32>
    %54 = vector.shape_cast %53 : vector<8xf32> to vector<8x1xf32>
    %55 = vector.broadcast %54 : vector<8x1xf32> to vector<8x8xf32>
    %56 = arith.subf %52, %55 : vector<8x8xf32>
    %57 = math.exp %56 : vector<8x8xf32>
    %cst_22 = arith.constant dense<0.000000e+00> : vector<8xf32>
    %58 = vector.multi_reduction <add>, %57, %cst_22 [1] : vector<8x8xf32> to vector<8xf32>
    %59 = vector.shape_cast %58 : vector<8xf32> to vector<8x1xf32>
    %60 = vector.broadcast %59 : vector<8x1xf32> to vector<8x8xf32>
    %61 = arith.divf %57, %60 : vector<8x8xf32>
    %cst_23 = arith.constant dense<0.000000e+00> : vector<8xf32>
    %62 = vector.multi_reduction <add>, %61, %cst_23 [0] : vector<8x8xf32> to vector<8xf32>
    %63 = vector.shape_cast %62 : vector<8xf32> to vector<1x8xf32>
    %cst_24 = arith.constant 8.000000e+00 : f32
    %64 = vector.broadcast %cst_24 : f32 to vector<1x8xf32>
    %65 = arith.divf %63, %64 : vector<1x8xf32>
    %cst_25 = arith.constant dense<0.000000e+00> : vector<1x8xf32>
    %66 = tpu.matmul %65, %49, %cst_25 {dimension_numbers = #tpu.dot_dimension_numbers<[1], [0], [0], [1], [0, 0, 1, 1], [], []>} : vector<1x8xf32>, vector<8x8xf32>, vector<1x8xf32> -> vector<1x8xf32>
    %67 = vector.extract_strided_slice %6 {offsets = [0, 24], sizes = [8, 8], strides = [1, 1]} : vector<8x96xf32> to vector<8x8xf32>
    %68 = vector.extract_strided_slice %6 {offsets = [0, 56], sizes = [8, 8], strides = [1, 1]} : vector<8x96xf32> to vector<8x8xf32>
    %69 = vector.extract_strided_slice %6 {offsets = [0, 88], sizes = [8, 8], strides = [1, 1]} : vector<8x96xf32> to vector<8x8xf32>
    %cst_26 = arith.constant dense<0.000000e+00> : vector<8x8xf32>
    %70 = tpu.matmul %67, %68, %cst_26 {dimension_numbers = #tpu.dot_dimension_numbers<[1], [1], [0], [0], [0, 0, 1, 0], [], []>} : vector<8x8xf32>, vector<8x8xf32>, vector<8x8xf32> -> vector<8x8xf32>
    %cst_27 = arith.constant 0.353553385 : f32
    %71 = vector.broadcast %cst_27 : f32 to vector<8x8xf32>
    %72 = arith.mulf %70, %71 : vector<8x8xf32>
    %cst_28 = arith.constant dense<0xFF800000> : vector<8xf32>
    %73 = vector.multi_reduction <maximumf>, %72, %cst_28 [1] : vector<8x8xf32> to vector<8xf32>
    %74 = vector.shape_cast %73 : vector<8xf32> to vector<8x1xf32>
    %75 = vector.broadcast %74 : vector<8x1xf32> to vector<8x8xf32>
    %76 = arith.subf %72, %75 : vector<8x8xf32>
    %77 = math.exp %76 : vector<8x8xf32>
    %cst_29 = arith.constant dense<0.000000e+00> : vector<8xf32>
    %78 = vector.multi_reduction <add>, %77, %cst_29 [1] : vector<8x8xf32> to vector<8xf32>
    %79 = vector.shape_cast %78 : vector<8xf32> to vector<8x1xf32>
    %80 = vector.broadcast %79 : vector<8x1xf32> to vector<8x8xf32>
    %81 = arith.divf %77, %80 : vector<8x8xf32>
    %cst_30 = arith.constant dense<0.000000e+00> : vector<8xf32>
    %82 = vector.multi_reduction <add>, %81, %cst_30 [0] : vector<8x8xf32> to vector<8xf32>
    %83 = vector.shape_cast %82 : vector<8xf32> to vector<1x8xf32>
    %cst_31 = arith.constant 8.000000e+00 : f32
    %84 = vector.broadcast %cst_31 : f32 to vector<1x8xf32>
    %85 = arith.divf %83, %84 : vector<1x8xf32>
    %cst_32 = arith.constant dense<0.000000e+00> : vector<1x8xf32>
    %86 = tpu.matmul %85, %69, %cst_32 {dimension_numbers = #tpu.dot_dimension_numbers<[1], [0], [0], [1], [0, 0, 1, 1], [], []>} : vector<1x8xf32>, vector<8x8xf32>, vector<1x8xf32> -> vector<1x8xf32>
    %87 = tpu.concatenate %26, %46, %66, %86 in 1 : vector<1x8xf32>, vector<1x8xf32>, vector<1x8xf32>, vector<1x8xf32> -> vector<1x32xf32>
    %88 = vector.extract_strided_slice %5 {offsets = [8, 0], sizes = [8, 96], strides = [1, 1]} : vector<16x96xf32> to vector<8x96xf32>
    %89 = vector.extract_strided_slice %88 {offsets = [0, 0], sizes = [8, 8], strides = [1, 1]} : vector<8x96xf32> to vector<8x8xf32>
    %90 = vector.extract_strided_slice %88 {offsets = [0, 32], sizes = [8, 8], strides = [1, 1]} : vector<8x96xf32> to vector<8x8xf32>
    %91 = vector.extract_strided_slice %88 {offsets = [0, 64], sizes = [8, 8], strides = [1, 1]} : vector<8x96xf32> to vector<8x8xf32>
    %cst_33 = arith.constant dense<0.000000e+00> : vector<8x8xf32>
    %92 = tpu.matmul %89, %90, %cst_33 {dimension_numbers = #tpu.dot_dimension_numbers<[1], [1], [0], [0], [0, 0, 1, 0], [], []>} : vector<8x8xf32>, vector<8x8xf32>, vector<8x8xf32> -> vector<8x8xf32>
    %cst_34 = arith.constant 0.353553385 : f32
    %93 = vector.broadcast %cst_34 : f32 to vector<8x8xf32>
    %94 = arith.mulf %92, %93 : vector<8x8xf32>
    %cst_35 = arith.constant dense<0xFF800000> : vector<8xf32>
    %95 = vector.multi_reduction <maximumf>, %94, %cst_35 [1] : vector<8x8xf32> to vector<8xf32>
    %96 = vector.shape_cast %95 : vector<8xf32> to vector<8x1xf32>
    %97 = vector.broadcast %96 : vector<8x1xf32> to vector<8x8xf32>
    %98 = arith.subf %94, %97 : vector<8x8xf32>
    %99 = math.exp %98 : vector<8x8xf32>
    %cst_36 = arith.constant dense<0.000000e+00> : vector<8xf32>
    %100 = vector.multi_reduction <add>, %99, %cst_36 [1] : vector<8x8xf32> to vector<8xf32>
    %101 = vector.shape_cast %100 : vector<8xf32> to vector<8x1xf32>
    %102 = vector.broadcast %101 : vector<8x1xf32> to vector<8x8xf32>
    %103 = arith.divf %99, %102 : vector<8x8xf32>
    %cst_37 = arith.constant dense<0.000000e+00> : vector<8xf32>
    %104 = vector.multi_reduction <add>, %103, %cst_37 [0] : vector<8x8xf32> to vector<8xf32>
    %105 = vector.shape_cast %104 : vector<8xf32> to vector<1x8xf32>
    %cst_38 = arith.constant 8.000000e+00 : f32
    %106 = vector.broadcast %cst_38 : f32 to vector<1x8xf32>
    %107 = arith.divf %105, %106 : vector<1x8xf32>
    %cst_39 = arith.constant dense<0.000000e+00> : vector<1x8xf32>
    %108 = tpu.matmul %107, %91, %cst_39 {dimension_numbers = #tpu.dot_dimension_numbers<[1], [0], [0], [1], [0, 0, 1, 1], [], []>} : vector<1x8xf32>, vector<8x8xf32>, vector<1x8xf32> -> vector<1x8xf32>
    %109 = vector.extract_strided_slice %88 {offsets = [0, 8], sizes = [8, 8], strides = [1, 1]} : vector<8x96xf32> to vector<8x8xf32>
    %110 = vector.extract_strided_slice %88 {offsets = [0, 40], sizes = [8, 8], strides = [1, 1]} : vector<8x96xf32> to vector<8x8xf32>
    %111 = vector.extract_strided_slice %88 {offsets = [0, 72], sizes = [8, 8], strides = [1, 1]} : vector<8x96xf32> to vector<8x8xf32>
    %cst_40 = arith.constant dense<0.000000e+00> : vector<8x8xf32>
    %112 = tpu.matmul %109, %110, %cst_40 {dimension_numbers = #tpu.dot_dimension_numbers<[1], [1], [0], [0], [0, 0, 1, 0], [], []>} : vector<8x8xf32>, vector<8x8xf32>, vector<8x8xf32> -> vector<8x8xf32>
    %cst_41 = arith.constant 0.353553385 : f32
    %113 = vector.broadcast %cst_41 : f32 to vector<8x8xf32>
    %114 = arith.mulf %112, %113 : vector<8x8xf32>
    %cst_42 = arith.constant dense<0xFF800000> : vector<8xf32>
    %115 = vector.multi_reduction <maximumf>, %114, %cst_42 [1] : vector<8x8xf32> to vector<8xf32>
    %116 = vector.shape_cast %115 : vector<8xf32> to vector<8x1xf32>
    %117 = vector.broadcast %116 : vector<8x1xf32> to vector<8x8xf32>
    %118 = arith.subf %114, %117 : vector<8x8xf32>
    %119 = math.exp %118 : vector<8x8xf32>
    %cst_43 = arith.constant dense<0.000000e+00> : vector<8xf32>
    %120 = vector.multi_reduction <add>, %119, %cst_43 [1] : vector<8x8xf32> to vector<8xf32>
    %121 = vector.shape_cast %120 : vector<8xf32> to vector<8x1xf32>
    %122 = vector.broadcast %121 : vector<8x1xf32> to vector<8x8xf32>
    %123 = arith.divf %119, %122 : vector<8x8xf32>
    %cst_44 = arith.constant dense<0.000000e+00> : vector<8xf32>
    %124 = vector.multi_reduction <add>, %123, %cst_44 [0] : vector<8x8xf32> to vector<8xf32>
    %125 = vector.shape_cast %124 : vector<8xf32> to vector<1x8xf32>
    %cst_45 = arith.constant 8.000000e+00 : f32
    %126 = vector.broadcast %cst_45 : f32 to vector<1x8xf32>
    %127 = arith.divf %125, %126 : vector<1x8xf32>
    %cst_46 = arith.constant dense<0.000000e+00> : vector<1x8xf32>
    %128 = tpu.matmul %127, %111, %cst_46 {dimension_numbers = #tpu.dot_dimension_numbers<[1], [0], [0], [1], [0, 0, 1, 1], [], []>} : vector<1x8xf32>, vector<8x8xf32>, vector<1x8xf32> -> vector<1x8xf32>
    %129 = vector.extract_strided_slice %88 {offsets = [0, 16], sizes = [8, 8], strides = [1, 1]} : vector<8x96xf32> to vector<8x8xf32>
    %130 = vector.extract_strided_slice %88 {offsets = [0, 48], sizes = [8, 8], strides = [1, 1]} : vector<8x96xf32> to vector<8x8xf32>
    %131 = vector.extract_strided_slice %88 {offsets = [0, 80], sizes = [8, 8], strides = [1, 1]} : vector<8x96xf32> to vector<8x8xf32>
    %cst_47 = arith.constant dense<0.000000e+00> : vector<8x8xf32>
    %132 = tpu.matmul %129, %130, %cst_47 {dimension_numbers = #tpu.dot_dimension_numbers<[1], [1], [0], [0], [0, 0, 1, 0], [], []>} : vector<8x8xf32>, vector<8x8xf32>, vector<8x8xf32> -> vector<8x8xf32>
    %cst_48 = arith.constant 0.353553385 : f32
    %133 = vector.broadcast %cst_48 : f32 to vector<8x8xf32>
    %134 = arith.mulf %132, %133 : vector<8x8xf32>
    %cst_49 = arith.constant dense<0xFF800000> : vector<8xf32>
    %135 = vector.multi_reduction <maximumf>, %134, %cst_49 [1] : vector<8x8xf32> to vector<8xf32>
    %136 = vector.shape_cast %135 : vector<8xf32> to vector<8x1xf32>
    %137 = vector.broadcast %136 : vector<8x1xf32> to vector<8x8xf32>
    %138 = arith.subf %134, %137 : vector<8x8xf32>
    %139 = math.exp %138 : vector<8x8xf32>
    %cst_50 = arith.constant dense<0.000000e+00> : vector<8xf32>
    %140 = vector.multi_reduction <add>, %139, %cst_50 [1] : vector<8x8xf32> to vector<8xf32>
    %141 = vector.shape_cast %140 : vector<8xf32> to vector<8x1xf32>
    %142 = vector.broadcast %141 : vector<8x1xf32> to vector<8x8xf32>
    %143 = arith.divf %139, %142 : vector<8x8xf32>
    %cst_51 = arith.constant dense<0.000000e+00> : vector<8xf32>
    %144 = vector.multi_reduction <add>, %143, %cst_51 [0] : vector<8x8xf32> to vector<8xf32>
    %145 = vector.shape_cast %144 : vector<8xf32> to vector<1x8xf32>
    %cst_52 = arith.constant 8.000000e+00 : f32
    %146 = vector.broadcast %cst_52 : f32 to vector<1x8xf32>
    %147 = arith.divf %145, %146 : vector<1x8xf32>
    %cst_53 = arith.constant dense<0.000000e+00> : vector<1x8xf32>
    %148 = tpu.matmul %147, %131, %cst_53 {dimension_numbers = #tpu.dot_dimension_numbers<[1], [0], [0], [1], [0, 0, 1, 1], [], []>} : vector<1x8xf32>, vector<8x8xf32>, vector<1x8xf32> -> vector<1x8xf32>
    %149 = vector.extract_strided_slice %88 {offsets = [0, 24], sizes = [8, 8], strides = [1, 1]} : vector<8x96xf32> to vector<8x8xf32>
    %150 = vector.extract_strided_slice %88 {offsets = [0, 56], sizes = [8, 8], strides = [1, 1]} : vector<8x96xf32> to vector<8x8xf32>
    %151 = vector.extract_strided_slice %88 {offsets = [0, 88], sizes = [8, 8], strides = [1, 1]} : vector<8x96xf32> to vector<8x8xf32>
    %cst_54 = arith.constant dense<0.000000e+00> : vector<8x8xf32>
    %152 = tpu.matmul %149, %150, %cst_54 {dimension_numbers = #tpu.dot_dimension_numbers<[1], [1], [0], [0], [0, 0, 1, 0], [], []>} : vector<8x8xf32>, vector<8x8xf32>, vector<8x8xf32> -> vector<8x8xf32>
    %cst_55 = arith.constant 0.353553385 : f32
    %153 = vector.broadcast %cst_55 : f32 to vector<8x8xf32>
    %154 = arith.mulf %152, %153 : vector<8x8xf32>
    %cst_56 = arith.constant dense<0xFF800000> : vector<8xf32>
    %155 = vector.multi_reduction <maximumf>, %154, %cst_56 [1] : vector<8x8xf32> to vector<8xf32>
    %156 = vector.shape_cast %155 : vector<8xf32> to vector<8x1xf32>
    %157 = vector.broadcast %156 : vector<8x1xf32> to vector<8x8xf32>
    %158 = arith.subf %154, %157 : vector<8x8xf32>
    %159 = math.exp %158 : vector<8x8xf32>
    %cst_57 = arith.constant dense<0.000000e+00> : vector<8xf32>
    %160 = vector.multi_reduction <add>, %159, %cst_57 [1] : vector<8x8xf32> to vector<8xf32>
    %161 = vector.shape_cast %160 : vector<8xf32> to vector<8x1xf32>
    %162 = vector.broadcast %161 : vector<8x1xf32> to vector<8x8xf32>
    %163 = arith.divf %159, %162 : vector<8x8xf32>
    %cst_58 = arith.constant dense<0.000000e+00> : vector<8xf32>
    %164 = vector.multi_reduction <add>, %163, %cst_58 [0] : vector<8x8xf32> to vector<8xf32>
    %165 = vector.shape_cast %164 : vector<8xf32> to vector<1x8xf32>
    %cst_59 = arith.constant 8.000000e+00 : f32
    %166 = vector.broadcast %cst_59 : f32 to vector<1x8xf32>
    %167 = arith.divf %165, %166 : vector<1x8xf32>
    %cst_60 = arith.constant dense<0.000000e+00> : vector<1x8xf32>
    %168 = tpu.matmul %167, %151, %cst_60 {dimension_numbers = #tpu.dot_dimension_numbers<[1], [0], [0], [1], [0, 0, 1, 1], [], []>} : vector<1x8xf32>, vector<8x8xf32>, vector<1x8xf32> -> vector<1x8xf32>
    %169 = tpu.concatenate %108, %128, %148, %168 in 1 : vector<1x8xf32>, vector<1x8xf32>, vector<1x8xf32>, vector<1x8xf32> -> vector<1x32xf32>
    %170 = tpu.concatenate %87, %169 in 0 : vector<1x32xf32>, vector<1x32xf32> -> vector<2x32xf32>
    %c0_61 = arith.constant 0 : index
    %c0_62 = arith.constant 0 : index
    %171 = vector.load %arg4[%c0_61, %c0_62] : memref<2x32xf32, #tpu.memory_space<vmem>>, vector<2x32xf32>
    tpu.vector_store %arg4[%c0_61, %c0_62], %170 {strides = array<i32>} : memref<2x32xf32, #tpu.memory_space<vmem>>, vector<2x32xf32>,
    return
  }
  func.func @transform_0(%arg0: i32) -> (i32, i32) {
    %c0_i32 = arith.constant 0 : i32
    %c0_i32_0 = arith.constant 0 : i32
    %c0_i32_1 = arith.constant 0 : i32
    return %c0_i32, %c0_i32_0 : i32, i32
  }
  func.func @transform_1(%arg0: i32) -> (i32, i32) {
    %c0_i32 = arith.constant 0 : i32
    %c0_i32_0 = arith.constant 0 : i32
    %c0_i32_1 = arith.constant 0 : i32
    return %c0_i32, %c0_i32_0 : i32, i32
  }
  func.func @transform_2(%arg0: i32) -> (i32, i32) {
    %c0_i32 = arith.constant 0 : i32
    %c0_i32_0 = arith.constant 0 : i32
    %c0_i32_1 = arith.constant 0 : i32
    return %c0_i32, %c0_i32_0 : i32, i32
  }
  func.func @transform_3(%arg0: i32) -> (i32, i32) {
    %c0_i32 = arith.constant 0 : i32
    %c0_i32_0 = arith.constant 0 : i32
    %c0_i32_1 = arith.constant 0 : i32
    return %c0_i32, %c0_i32_0 : i32, i32
  }
}

</mosaic_0001>

<llo_original>
// kernel: tpu_custom_call.1
$region0: #{tpu_custom_call.1}
  #allocation0 [shape = 'u32[]', space=smem, size = 0x4, offset = 0x4, fixed_abs, tag = 'smem constant byte address 0x4 - core index']
  #allocation1 [shape = 'u32[144,128]{1,0:T(1,128)}', space=vmem, size = 0x12000, scoped, tag = 'internal scratch']
  %s0 = inlined_call_operand.hbm [shape: f32[16,32], index: 0, kind: input, shape index: {}]
  %s1 = inlined_call_operand.hbm [shape: f32[32,96], index: 1, kind: input, shape index: {}]
  %s2 = inlined_call_operand.vmem [shape: f32[1,96], index: 2, kind: input, shape index: {}]
  %s3 = inlined_call_operand.hbm [shape: f32[2,32], index: 3, kind: output, shape index: {}]
  %s4 = sld [smem:[#allocation0]]
  $region30: #{tpu_custom_call.1} parent=0
    _
  %s6 = ssub.s32 1, %s4
  %s7 = scalar_select 0, %s6, %s4
  $region1: #{tpu_custom_call.1} parent=0
    #allocation2 [shape = 'u8[8192]{0}', space=vmem, size = 0x2000, scoped, tag = 'input window, operand 0, single buffered']
    #allocation3 [shape = 's32[1]{0}', space=sflag, size = 0x4, scoped, tag = 'scoped memory for tpu_custom_call.1']
    #allocation4 [shape = 's32[1]{0}', space=sflag, size = 0x4, scoped, tag = 'scoped memory for tpu_custom_call.1']
    #allocation5 [shape = 'u8[16384]{0}', space=vmem, size = 0x4000, scoped, tag = 'input window, operand 1, single buffered']
    #allocation6 [shape = 's32[1]{0}', space=sflag, size = 0x4, scoped, tag = 'scoped memory for tpu_custom_call.1']
    #allocation7 [shape = 'u8[1024]{0}', space=vmem, size = 0x400, scoped, tag = 'output window, operand 0, single buffered']
    %8 = vsyncpa [#allocation3], 0
    %9 = vsyncpa [#allocation6], 0
    %10 = vsyncpa [#allocation4], 0
    // Predicated region
    $region2: #{tpu_custom_call.1} parent=1 // pred_check
      _
    $region3: #{tpu_custom_call.1} parent=1 // pred_check_branch
      %12 = sbr.rel (0) target = $region5
    $region4: #{tpu_custom_call.1} parent=1 // pred_region
      %s14 = ssub.s32 256, 256
      %15 = vsyncadd [#allocation3], %s14
      %s16 = sshll.u32 [#allocation2], 4
      %s17 = int_to_ptr.vmem [resolvable:$true] %s16
      %22 = dma.hbm_to_vmem [thread:$0]  %s0, 256, %s17, [#allocation3], 128, 128, 8
    $region5: #{tpu_custom_call.1} parent=1 // pred_fallthru
      _
    // Predicated region
    $region6: #{tpu_custom_call.1} parent=1 // pred_check
      _
    $region7: #{tpu_custom_call.1} parent=1 // pred_check_branch
      %24 = sbr.rel (0) target = $region9
    $region8: #{tpu_custom_call.1} parent=1 // pred_region
      %s26 = ssub.s32 512, 512
      %27 = vsyncadd [#allocation6], %s26
      %s28 = sshll.u32 [#allocation5], 4
      %s29 = int_to_ptr.vmem [resolvable:$true] %s28
      %34 = dma.hbm_to_vmem [thread:$0]  %s1, 512, %s29, [#allocation6], 128, 128, 8
    $region9: #{tpu_custom_call.1} parent=1 // pred_fallthru
      _
    // Predicated region
    $region10: #{tpu_custom_call.1} parent=1 // pred_check
      _
    $region11: #{tpu_custom_call.1} parent=1 // pred_check_branch
      %36 = sbr.rel (0) target = $region13
    $region12: #{tpu_custom_call.1} parent=1 // pred_region
      _
    $region13: #{tpu_custom_call.1} parent=1 // pred_fallthru
      _
    // Predicated region
    $region14: #{tpu_custom_call.1} parent=1 // pred_check
      _
    $region15: #{tpu_custom_call.1} parent=1 // pred_check_branch
      %38 = sbr.rel (0) target = $region17
    $region16: #{tpu_custom_call.1} parent=1 // pred_region
      %39 = dma.done [#allocation3], 256
    $region17: #{tpu_custom_call.1} parent=1 // pred_fallthru
      _
    // Predicated region
    $region18: #{tpu_custom_call.1} parent=1 // pred_check
      _
    $region19: #{tpu_custom_call.1} parent=1 // pred_check_branch
      %41 = sbr.rel (0) target = $region21
    $region20: #{tpu_custom_call.1} parent=1 // pred_region
      %42 = dma.done [#allocation6], 512
    $region21: #{tpu_custom_call.1} parent=1 // pred_fallthru
      _
    %v43 = vld [vmem:[#allocation2] sm:$0xff]
    %v44 = vld [vmem:[#allocation2 + $0x8] sm:$0xff]
    %v45 = vld [vmem:[#allocation5] sm:$0xff]
    %v46 = vld [vmem:[#allocation5 + $0x8] sm:$0xff]
    %v47 = vld [vmem:[#allocation5 + $0x10] sm:$0xff]
    %v48 = vld [vmem:[#allocation5 + $0x18] sm:$0xff]
    %v49 = vld [vmem:[%s2] sm:$0x1]
    %v51 = vlaneseq
    %v52 = vshrl.u32 %v51, 7
    %v53 = vsub.s32 0, %v52
    %v54 = vrot.slane %v49, %v53
    %vm56 = vcmask 261120
    %v58 = vsel %vm56, %v43, 0
    %v61 = vsel %vm56, %v44, 0
    %63 = vmatprep.subr.mxu0 0.0
    %64 = vmatpush1.msra.mxu0 %v45
    %65 = vmatprep.subr.mxu0 0.0
    %66 = vmatpush1.msra.mxu0 %v46
    %67 = vmatprep.subr.mxu0 0.0
    %68 = vmatpush1.msra.mxu0 %v47
    %69 = vmatprep.subr.mxu0 0.0
    %70 = vmatpush1.msra.mxu0 %v48
    %71 = vmatprep.subr.mxu0 0.0
    %72 = vmatpush1.msra.mxu0 0.0
    %73 = vmatprep.subr.mxu0 0.0
    %74 = vmatpush1.msra.mxu0 0.0
    %75 = vmatprep.subr.mxu0 0.0
    %76 = vmatpush1.msra.mxu0 0.0
    %77 = vmatprep.subr.mxu0 0.0
    %78 = vmatpush1.msra.mxu0 0.0
    %79 = vmatprep.subr.mxu0 0.0
    %80 = vmatpush1.msra.mxu0 0.0
    %81 = vmatprep.subr.mxu0 0.0
    %82 = vmatpush1.msra.mxu0 0.0
    %83 = vmatprep.subr.mxu0 0.0
    %84 = vmatpush1.msra.mxu0 0.0
    %85 = vmatprep.subr.mxu0 0.0
    %86 = vmatpush1.msra.mxu0 0.0
    %87 = vmatprep.subr.mxu0 0.0
    %88 = vmatpush1.msra.mxu0 0.0
    %89 = vmatprep.subr.mxu0 0.0
    %90 = vmatpush1.msra.mxu0 0.0
    %91 = vmatprep.subr.mxu0 0.0
    %92 = vmatpush1.msra.mxu0 0.0
    %93 = vmatprep.subr.mxu0 0.0
    %94 = vmatpush1.msra.mxu0 0.0
    %95 = vmatprep.subr.mxu0 0.0
    %96 = vmatpush1.msra.mxu0 0.0
    %97 = vmatprep.subr.mxu0 0.0
    %98 = vmatpush1.msra.mxu0 0.0
    %99 = vmatprep.subr.mxu0 0.0
    %100 = vmatpush1.msra.mxu0 0.0
    %101 = vmatprep.subr.mxu0 0.0
    %102 = vmatpush1.msra.mxu0 0.0
    %103 = vmatprep.subr.mxu0 0.0
    %104 = vmatpush1.msra.mxu0 0.0
    %105 = vmatprep.subr.mxu0 0.0
    %106 = vmatpush1.msra.mxu0 0.0
    %107 = vmatprep.subr.mxu0 0.0
    %108 = vmatpush1.msra.mxu0 0.0
    %109 = vmatprep.subr.mxu0 0.0
    %110 = vmatpush1.msra.mxu0 0.0
    %111 = vmatprep.subr.mxu0 0.0
    %112 = vmatpush1.msra.mxu0 0.0
    %113 = vmatprep.subr.mxu0 0.0
    %114 = vmatpush1.msra.mxu0 0.0
    %115 = vmatprep.subr.mxu0 0.0
    %116 = vmatpush1.msra.mxu0 0.0
    %117 = vmatprep.subr.mxu0 0.0
    %118 = vmatpush1.msra.mxu0 0.0
    %119 = vmatprep.subr.mxu0 0.0
    %120 = vmatpush1.msra.mxu0 0.0
    %121 = vmatprep.subr.mxu0 0.0
    %122 = vmatpush1.msra.mxu0 0.0
    %123 = vmatprep.subr.mxu0 0.0
    %124 = vmatpush1.msra.mxu0 0.0
    %125 = vmatprep.subr.mxu0 0.0
    %126 = vmatpush1.msra.mxu0 0.0
    %127 = vmatprep.mubr.f32.mxu0 0.0
    %128 = vmatmul.mubr.f32.gmra.mrb[0].mxu0 %v58
    %v129 = vpop.f32.mrb[0].mxu0
    %v130 = vadd.f32 %v54, %v129
    %v131 = vpop.f32.mrb[0].mxu0
    %132 = vmatprep.mubr.f32.mxu0 0.0
    %133 = vmatmul.mubr.f32.gmra.mrb[0].mxu0 %v61
    %v134 = vpop.f32.mrb[0].mxu0
    %v135 = vadd.f32 %v54, %v134
    %v136 = vpop.f32.mrb[0].mxu0
    %137 = vdwg.mxu0
    %139 = vrot.lane.b32.xlu0 %v130, 96
    %v140 = vpop.permute.xlu0 %139
    %vm141 = vcmask 64512
    %v142 = vsel %vm141, %v130, 0
    %v144 = vsel %vm141, %v140, 0
    %146 = vmatprep.subr.mxu0 0.0
    %147 = vmatpush1.xpose.msra.mxu0 %v144
    %148 = vmatprep.subr.mxu0 0.0
    %149 = vmatpush1.xpose.msra.mxu0 0.0
    %150 = vmatprep.subr.mxu0 0.0
    %151 = vmatpush1.xpose.msra.mxu0 0.0
    %152 = vmatprep.subr.mxu0 0.0
    %153 = vmatpush1.xpose.msra.mxu0 0.0
    %154 = vmatprep.subr.mxu0 0.0
    %155 = vmatpush1.xpose.msra.mxu0 0.0
    %156 = vmatprep.subr.mxu0 0.0
    %157 = vmatpush1.xpose.msra.mxu0 0.0
    %158 = vmatprep.subr.mxu0 0.0
    %159 = vmatpush1.xpose.msra.mxu0 0.0
    %160 = vmatprep.subr.mxu0 0.0
    %161 = vmatpush1.xpose.msra.mxu0 0.0
    %162 = vmatprep.subr.mxu0 0.0
    %163 = vmatpush1.xpose.msra.mxu0 0.0
    %164 = vmatprep.subr.mxu0 0.0
    %165 = vmatpush1.xpose.msra.mxu0 0.0
    %166 = vmatprep.subr.mxu0 0.0
    %167 = vmatpush1.xpose.msra.mxu0 0.0
    %168 = vmatprep.subr.mxu0 0.0
    %169 = vmatpush1.xpose.msra.mxu0 0.0
    %170 = vmatprep.subr.mxu0 0.0
    %171 = vmatpush1.xpose.msra.mxu0 0.0
    %172 = vmatprep.subr.mxu0 0.0
    %173 = vmatpush1.xpose.msra.mxu0 0.0
    %174 = vmatprep.subr.mxu0 0.0
    %175 = vmatpush1.xpose.msra.mxu0 0.0
    %176 = vmatprep.subr.mxu0 0.0
    %177 = vmatpush1.xpose.msra.mxu0 0.0
    %178 = vmatprep.subr.mxu0 0.0
    %179 = vmatpush1.xpose.msra.mxu0 0.0
    %180 = vmatprep.subr.mxu0 0.0
    %181 = vmatpush1.xpose.msra.mxu0 0.0
    %182 = vmatprep.subr.mxu0 0.0
    %183 = vmatpush1.xpose.msra.mxu0 0.0
    %184 = vmatprep.subr.mxu0 0.0
    %185 = vmatpush1.xpose.msra.mxu0 0.0
    %186 = vmatprep.subr.mxu0 0.0
    %187 = vmatpush1.xpose.msra.mxu0 0.0
    %188 = vmatprep.subr.mxu0 0.0
    %189 = vmatpush1.xpose.msra.mxu0 0.0
    %190 = vmatprep.subr.mxu0 0.0
    %191 = vmatpush1.xpose.msra.mxu0 0.0
    %192 = vmatprep.subr.mxu0 0.0
    %193 = vmatpush1.xpose.msra.mxu0 0.0
    %194 = vmatprep.subr.mxu0 0.0
    %195 = vmatpush1.xpose.msra.mxu0 0.0
    %196 = vmatprep.subr.mxu0 0.0
    %197 = vmatpush1.xpose.msra.mxu0 0.0
    %198 = vmatprep.subr.mxu0 0.0
    %199 = vmatpush1.xpose.msra.mxu0 0.0
    %200 = vmatprep.subr.mxu0 0.0
    %201 = vmatpush1.xpose.msra.mxu0 0.0
    %202 = vmatprep.subr.mxu0 0.0
    %203 = vmatpush1.xpose.msra.mxu0 0.0
    %204 = vmatprep.subr.mxu0 0.0
    %205 = vmatpush1.xpose.msra.mxu0 0.0
    %206 = vmatprep.subr.mxu0 0.0
    %207 = vmatpush1.xpose.msra.mxu0 0.0
    %208 = vmatprep.subr.mxu0 0.0
    %209 = vmatpush1.xpose.msra.mxu0 0.0
    %210 = vmatprep.mubr.f32.mxu0 0.0
    %211 = vmatmul.mubr.f32.gmra.mrb[0].mxu0 %v142
    %v212 = vpop.f32.mrb[0].mxu0
    %v213 = vadd.f32 0.0, %v212
    %v214 = vpop.f32.mrb[0].mxu0
    %215 = vdwg.mxu0
    %v216 = vmul.f32 %v213, 0.35355338
    %v217 = vsel %vm141, %v216, -inf
    %218 = vmax.xlane.f32.xlu0 %v217
    %v219 = vpop.xlane.xlu0 %218
    %v220 = vsub.f32 %v216, %v219
    %v221 = vmul.f32 %v220, 1.442695
    %v222 = vpow.pop %v221
    %v223 = vsel %vm141, %v222, 0.0
    %224 = vadd.xlane.f32.xlu0 %v223
    %v225 = vpop.xlane.xlu0 %224
    %v226 = vrcp.pop %v225
    %v227 = vmul.f32 %v222, %v226
    %v228 = vsel %vm141, %v227, 0.0
    %v229 = vrot.slane %v228, 4
    %v230 = vadd.f32 %v228, %v229
    %v231 = vrot.slane %v230, 2
    %v232 = vadd.f32 %v230, %v231
    %v233 = vrot.slane %v232, 1
    %v234 = vadd.f32 %v232, %v233
    %v235 = vrcp.pop 8.0
    %v236 = vmul.f32 %v234, %v235
    %237 = vrot.lane.b32.xlu0 %v130, 64
    %v238 = vpop.permute.xlu0 %237
    %v241 = vsel %vm141, %v236, 0
    %243 = vmatprep.subr.mxu0 0.0
    %244 = vmatpush1.msra.mxu0 %v238
    %245 = vmatprep.subr.mxu0 0.0
    %246 = vmatpush1.msra.mxu0 0.0
    %247 = vmatprep.subr.mxu0 0.0
    %248 = vmatpush1.msra.mxu0 0.0
    %249 = vmatprep.subr.mxu0 0.0
    %250 = vmatpush1.msra.mxu0 0.0
    %251 = vmatprep.subr.mxu0 0.0
    %252 = vmatpush1.msra.mxu0 0.0
    %253 = vmatprep.subr.mxu0 0.0
    %254 = vmatpush1.msra.mxu0 0.0
    %255 = vmatprep.subr.mxu0 0.0
    %256 = vmatpush1.msra.mxu0 0.0
    %257 = vmatprep.subr.mxu0 0.0
    %258 = vmatpush1.msra.mxu0 0.0
    %259 = vmatprep.subr.mxu0 0.0
    %260 = vmatpush1.msra.mxu0 0.0
    %261 = vmatprep.subr.mxu0 0.0
    %262 = vmatpush1.msra.mxu0 0.0
    %263 = vmatprep.subr.mxu0 0.0
    %264 = vmatpush1.msra.mxu0 0.0
    %265 = vmatprep.subr.mxu0 0.0
    %266 = vmatpush1.msra.mxu0 0.0
    %267 = vmatprep.subr.mxu0 0.0
    %268 = vmatpush1.msra.mxu0 0.0
    %269 = vmatprep.subr.mxu0 0.0
    %270 = vmatpush1.msra.mxu0 0.0
    %271 = vmatprep.subr.mxu0 0.0
    %272 = vmatpush1.msra.mxu0 0.0
    %273 = vmatprep.subr.mxu0 0.0
    %274 = vmatpush1.msra.mxu0 0.0
    %275 = vmatprep.subr.mxu0 0.0
    %276 = vmatpush1.msra.mxu0 0.0
    %277 = vmatprep.subr.mxu0 0.0
    %278 = vmatpush1.msra.mxu0 0.0
    %279 = vmatprep.subr.mxu0 0.0
    %280 = vmatpush1.msra.mxu0 0.0
    %281 = vmatprep.subr.mxu0 0.0
    %282 = vmatpush1.msra.mxu0 0.0
    %283 = vmatprep.subr.mxu0 0.0
    %284 = vmatpush1.msra.mxu0 0.0
    %285 = vmatprep.subr.mxu0 0.0
    %286 = vmatpush1.msra.mxu0 0.0
    %287 = vmatprep.subr.mxu0 0.0
    %288 = vmatpush1.msra.mxu0 0.0
    %289 = vmatprep.subr.mxu0 0.0
    %290 = vmatpush1.msra.mxu0 0.0
    %291 = vmatprep.subr.mxu0 0.0
    %292 = vmatpush1.msra.mxu0 0.0
    %293 = vmatprep.subr.mxu0 0.0
    %294 = vmatpush1.msra.mxu0 0.0
    %295 = vmatprep.subr.mxu0 0.0
    %296 = vmatpush1.msra.mxu0 0.0
    %297 = vmatprep.subr.mxu0 0.0
    %298 = vmatpush1.msra.mxu0 0.0
    %299 = vmatprep.subr.mxu0 0.0
    %300 = vmatpush1.msra.mxu0 0.0
    %301 = vmatprep.subr.mxu0 0.0
    %302 = vmatpush1.msra.mxu0 0.0
    %303 = vmatprep.subr.mxu0 0.0
    %304 = vmatpush1.msra.mxu0 0.0
    %305 = vmatprep.subr.mxu0 0.0
    %306 = vmatpush1.msra.mxu0 0.0
    %307 = vmatprep.mubr.f32.mxu0 0.0
    %308 = vmatmul.mubr.f32.gmra.mrb[0].mxu0 %v241
    %v309 = vpop.f32.mrb[0].mxu0
    %v310 = vadd.f32 0.0, %v309
    %v311 = vpop.f32.mrb[0].mxu0
    %312 = vdwg.mxu0
    %313 = vrot.lane.b32.xlu0 %v130, 120
    %v314 = vpop.permute.xlu0 %313
    %315 = vrot.lane.b32.xlu0 %v130, 88
    %v316 = vpop.permute.xlu0 %315
    %v317 = vsel %vm141, %v314, 0
    %v319 = vsel %vm141, %v316, 0
    %321 = vmatprep.subr.mxu0 0.0
    %322 = vmatpush1.xpose.msra.mxu0 %v319
    %323 = vmatprep.subr.mxu0 0.0
    %324 = vmatpush1.xpose.msra.mxu0 0.0
    %325 = vmatprep.subr.mxu0 0.0
    %326 = vmatpush1.xpose.msra.mxu0 0.0
    %327 = vmatprep.subr.mxu0 0.0
    %328 = vmatpush1.xpose.msra.mxu0 0.0
    %329 = vmatprep.subr.mxu0 0.0
    %330 = vmatpush1.xpose.msra.mxu0 0.0
    %331 = vmatprep.subr.mxu0 0.0
    %332 = vmatpush1.xpose.msra.mxu0 0.0
    %333 = vmatprep.subr.mxu0 0.0
    %334 = vmatpush1.xpose.msra.mxu0 0.0
    %335 = vmatprep.subr.mxu0 0.0
    %336 = vmatpush1.xpose.msra.mxu0 0.0
    %337 = vmatprep.subr.mxu0 0.0
    %338 = vmatpush1.xpose.msra.mxu0 0.0
    %339 = vmatprep.subr.mxu0 0.0
    %340 = vmatpush1.xpose.msra.mxu0 0.0
    %341 = vmatprep.subr.mxu0 0.0
    %342 = vmatpush1.xpose.msra.mxu0 0.0
    %343 = vmatprep.subr.mxu0 0.0
    %344 = vmatpush1.xpose.msra.mxu0 0.0
    %345 = vmatprep.subr.mxu0 0.0
    %346 = vmatpush1.xpose.msra.mxu0 0.0
    %347 = vmatprep.subr.mxu0 0.0
    %348 = vmatpush1.xpose.msra.mxu0 0.0
    %349 = vmatprep.subr.mxu0 0.0
    %350 = vmatpush1.xpose.msra.mxu0 0.0
    %351 = vmatprep.subr.mxu0 0.0
    %352 = vmatpush1.xpose.msra.mxu0 0.0
    %353 = vmatprep.subr.mxu0 0.0
    %354 = vmatpush1.xpose.msra.mxu0 0.0
    %355 = vmatprep.subr.mxu0 0.0
    %356 = vmatpush1.xpose.msra.mxu0 0.0
    %357 = vmatprep.subr.mxu0 0.0
    %358 = vmatpush1.xpose.msra.mxu0 0.0
    %359 = vmatprep.subr.mxu0 0.0
    %360 = vmatpush1.xpose.msra.mxu0 0.0
    %361 = vmatprep.subr.mxu0 0.0
    %362 = vmatpush1.xpose.msra.mxu0 0.0
    %363 = vmatprep.subr.mxu0 0.0
    %364 = vmatpush1.xpose.msra.mxu0 0.0
    %365 = vmatprep.subr.mxu0 0.0
    %366 = vmatpush1.xpose.msra.mxu0 0.0
    %367 = vmatprep.subr.mxu0 0.0
    %368 = vmatpush1.xpose.msra.mxu0 0.0
    %369 = vmatprep.subr.mxu0 0.0
    %370 = vmatpush1.xpose.msra.mxu0 0.0
    %371 = vmatprep.subr.mxu0 0.0
    %372 = vmatpush1.xpose.msra.mxu0 0.0
    %373 = vmatprep.subr.mxu0 0.0
    %374 = vmatpush1.xpose.msra.mxu0 0.0
    %375 = vmatprep.subr.mxu0 0.0
    %376 = vmatpush1.xpose.msra.mxu0 0.0
    %377 = vmatprep.subr.mxu0 0.0
    %378 = vmatpush1.xpose.msra.mxu0 0.0
    %379 = vmatprep.subr.mxu0 0.0
    %380 = vmatpush1.xpose.msra.mxu0 0.0
    %381 = vmatprep.subr.mxu0 0.0
    %382 = vmatpush1.xpose.msra.mxu0 0.0
    %383 = vmatprep.subr.mxu0 0.0
    %384 = vmatpush1.xpose.msra.mxu0 0.0
    %385 = vmatprep.mubr.f32.mxu0 0.0
    %386 = vmatmul.mubr.f32.gmra.mrb[0].mxu0 %v317
    %v387 = vpop.f32.mrb[0].mxu0
    %v388 = vadd.f32 0.0, %v387
    %v389 = vpop.f32.mrb[0].mxu0
    %390 = vdwg.mxu0
    %v391 = vmul.f32 %v388, 0.35355338
    %v392 = vsel %vm141, %v391, -inf
    %393 = vmax.xlane.f32.xlu0 %v392
    %v394 = vpop.xlane.xlu0 %393
    %v395 = vsub.f32 %v391, %v394
    %v396 = vmul.f32 %v395, 1.442695
    %v397 = vpow.pop %v396
    %v398 = vsel %vm141, %v397, 0.0
    %399 = vadd.xlane.f32.xlu0 %v398
    %v400 = vpop.xlane.xlu0 %399
    %v401 = vrcp.pop %v400
    %v402 = vmul.f32 %v397, %v401
    %v403 = vsel %vm141, %v402, 0.0
    %v404 = vrot.slane %v403, 4
    %v405 = vadd.f32 %v403, %v404
    %v406 = vrot.slane %v405, 2
    %v407 = vadd.f32 %v405, %v406
    %v408 = vrot.slane %v407, 1
    %v409 = vadd.f32 %v407, %v408
    %v410 = vmul.f32 %v409, %v235
    %411 = vrot.lane.b32.xlu0 %v130, 56
    %v412 = vpop.permute.xlu0 %411
    %v415 = vsel %vm141, %v410, 0
    %417 = vmatprep.subr.mxu0 0.0
    %418 = vmatpush1.msra.mxu0 %v412
    %419 = vmatprep.subr.mxu0 0.0
    %420 = vmatpush1.msra.mxu0 0.0
    %421 = vmatprep.subr.mxu0 0.0
    %422 = vmatpush1.msra.mxu0 0.0
    %423 = vmatprep.subr.mxu0 0.0
    %424 = vmatpush1.msra.mxu0 0.0
    %425 = vmatprep.subr.mxu0 0.0
    %426 = vmatpush1.msra.mxu0 0.0
    %427 = vmatprep.subr.mxu0 0.0
    %428 = vmatpush1.msra.mxu0 0.0
    %429 = vmatprep.subr.mxu0 0.0
    %430 = vmatpush1.msra.mxu0 0.0
    %431 = vmatprep.subr.mxu0 0.0
    %432 = vmatpush1.msra.mxu0 0.0
    %433 = vmatprep.subr.mxu0 0.0
    %434 = vmatpush1.msra.mxu0 0.0
    %435 = vmatprep.subr.mxu0 0.0
    %436 = vmatpush1.msra.mxu0 0.0
    %437 = vmatprep.subr.mxu0 0.0
    %438 = vmatpush1.msra.mxu0 0.0
    %439 = vmatprep.subr.mxu0 0.0
    %440 = vmatpush1.msra.mxu0 0.0
    %441 = vmatprep.subr.mxu0 0.0
    %442 = vmatpush1.msra.mxu0 0.0
    %443 = vmatprep.subr.mxu0 0.0
    %444 = vmatpush1.msra.mxu0 0.0
    %445 = vmatprep.subr.mxu0 0.0
    %446 = vmatpush1.msra.mxu0 0.0
    %447 = vmatprep.subr.mxu0 0.0
    %448 = vmatpush1.msra.mxu0 0.0
    %449 = vmatprep.subr.mxu0 0.0
    %450 = vmatpush1.msra.mxu0 0.0
    %451 = vmatprep.subr.mxu0 0.0
    %452 = vmatpush1.msra.mxu0 0.0
    %453 = vmatprep.subr.mxu0 0.0
    %454 = vmatpush1.msra.mxu0 0.0
    %455 = vmatprep.subr.mxu0 0.0
    %456 = vmatpush1.msra.mxu0 0.0
    %457 = vmatprep.subr.mxu0 0.0
    %458 = vmatpush1.msra.mxu0 0.0
    %459 = vmatprep.subr.mxu0 0.0
    %460 = vmatpush1.msra.mxu0 0.0
    %461 = vmatprep.subr.mxu0 0.0
    %462 = vmatpush1.msra.mxu0 0.0
    %463 = vmatprep.subr.mxu0 0.0
    %464 = vmatpush1.msra.mxu0 0.0
    %465 = vmatprep.subr.mxu0 0.0
    %466 = vmatpush1.msra.mxu0 0.0
    %467 = vmatprep.subr.mxu0 0.0
    %468 = vmatpush1.msra.mxu0 0.0
    %469 = vmatprep.subr.mxu0 0.0
    %470 = vmatpush1.msra.mxu0 0.0
    %471 = vmatprep.subr.mxu0 0.0
    %472 = vmatpush1.msra.mxu0 0.0
    %473 = vmatprep.subr.mxu0 0.0
    %474 = vmatpush1.msra.mxu0 0.0
    %475 = vmatprep.subr.mxu0 0.0
    %476 = vmatpush1.msra.mxu0 0.0
    %477 = vmatprep.subr.mxu0 0.0
    %478 = vmatpush1.msra.mxu0 0.0
    %479 = vmatprep.subr.mxu0 0.0
    %480 = vmatpush1.msra.mxu0 0.0
    %481 = vmatprep.mubr.f32.mxu0 0.0
    %482 = vmatmul.mubr.f32.gmra.mrb[0].mxu0 %v415
    %v483 = vpop.f32.mrb[0].mxu0
    %v484 = vadd.f32 0.0, %v483
    %v485 = vpop.f32.mrb[0].mxu0
    %486 = vdwg.mxu0
    %487 = vrot.lane.b32.xlu0 %v130, 112
    %v488 = vpop.permute.xlu0 %487
    %489 = vrot.lane.b32.xlu0 %v130, 80
    %v490 = vpop.permute.xlu0 %489
    %v491 = vsel %vm141, %v488, 0
    %v493 = vsel %vm141, %v490, 0
    %495 = vmatprep.subr.mxu0 0.0
    %496 = vmatpush1.xpose.msra.mxu0 %v493
    %497 = vmatprep.subr.mxu0 0.0
    %498 = vmatpush1.xpose.msra.mxu0 0.0
    %499 = vmatprep.subr.mxu0 0.0
    %500 = vmatpush1.xpose.msra.mxu0 0.0
    %501 = vmatprep.subr.mxu0 0.0
    %502 = vmatpush1.xpose.msra.mxu0 0.0
    %503 = vmatprep.subr.mxu0 0.0
    %504 = vmatpush1.xpose.msra.mxu0 0.0
    %505 = vmatprep.subr.mxu0 0.0
    %506 = vmatpush1.xpose.msra.mxu0 0.0
    %507 = vmatprep.subr.mxu0 0.0
    %508 = vmatpush1.xpose.msra.mxu0 0.0
    %509 = vmatprep.subr.mxu0 0.0
    %510 = vmatpush1.xpose.msra.mxu0 0.0
    %511 = vmatprep.subr.mxu0 0.0
    %512 = vmatpush1.xpose.msra.mxu0 0.0
    %513 = vmatprep.subr.mxu0 0.0
    %514 = vmatpush1.xpose.msra.mxu0 0.0
    %515 = vmatprep.subr.mxu0 0.0
    %516 = vmatpush1.xpose.msra.mxu0 0.0
    %517 = vmatprep.subr.mxu0 0.0
    %518 = vmatpush1.xpose.msra.mxu0 0.0
    %519 = vmatprep.subr.mxu0 0.0
    %520 = vmatpush1.xpose.msra.mxu0 0.0
    %521 = vmatprep.subr.mxu0 0.0
    %522 = vmatpush1.xpose.msra.mxu0 0.0
    %523 = vmatprep.subr.mxu0 0.0
    %524 = vmatpush1.xpose.msra.mxu0 0.0
    %525 = vmatprep.subr.mxu0 0.0
    %526 = vmatpush1.xpose.msra.mxu0 0.0
    %527 = vmatprep.subr.mxu0 0.0
    %528 = vmatpush1.xpose.msra.mxu0 0.0
    %529 = vmatprep.subr.mxu0 0.0
    %530 = vmatpush1.xpose.msra.mxu0 0.0
    %531 = vmatprep.subr.mxu0 0.0
    %532 = vmatpush1.xpose.msra.mxu0 0.0
    %533 = vmatprep.subr.mxu0 0.0
    %534 = vmatpush1.xpose.msra.mxu0 0.0
    %535 = vmatprep.subr.mxu0 0.0
    %536 = vmatpush1.xpose.msra.mxu0 0.0
    %537 = vmatprep.subr.mxu0 0.0
    %538 = vmatpush1.xpose.msra.mxu0 0.0
    %539 = vmatprep.subr.mxu0 0.0
    %540 = vmatpush1.xpose.msra.mxu0 0.0
    %541 = vmatprep.subr.mxu0 0.0
    %542 = vmatpush1.xpose.msra.mxu0 0.0
    %543 = vmatprep.subr.mxu0 0.0
    %544 = vmatpush1.xpose.msra.mxu0 0.0
    %545 = vmatprep.subr.mxu0 0.0
    %546 = vmatpush1.xpose.msra.mxu0 0.0
    %547 = vmatprep.subr.mxu0 0.0
    %548 = vmatpush1.xpose.msra.mxu0 0.0
    %549 = vmatprep.subr.mxu0 0.0
    %550 = vmatpush1.xpose.msra.mxu0 0.0
    %551 = vmatprep.subr.mxu0 0.0
    %552 = vmatpush1.xpose.msra.mxu0 0.0
    %553 = vmatprep.subr.mxu0 0.0
    %554 = vmatpush1.xpose.msra.mxu0 0.0
    %555 = vmatprep.subr.mxu0 0.0
    %556 = vmatpush1.xpose.msra.mxu0 0.0
    %557 = vmatprep.subr.mxu0 0.0
    %558 = vmatpush1.xpose.msra.mxu0 0.0
    %559 = vmatprep.mubr.f32.mxu0 0.0
    %560 = vmatmul.mubr.f32.gmra.mrb[0].mxu0 %v491
    %v561 = vpop.f32.mrb[0].mxu0
    %v562 = vadd.f32 0.0, %v561
    %v563 = vpop.f32.mrb[0].mxu0
    %564 = vdwg.mxu0
    %v565 = vmul.f32 %v562, 0.35355338
    %v566 = vsel %vm141, %v565, -inf
    %567 = vmax.xlane.f32.xlu0 %v566
    %v568 = vpop.xlane.xlu0 %567
    %v569 = vsub.f32 %v565, %v568
    %v570 = vmul.f32 %v569, 1.442695
    %v571 = vpow.pop %v570
    %v572 = vsel %vm141, %v571, 0.0
    %573 = vadd.xlane.f32.xlu0 %v572
    %v574 = vpop.xlane.xlu0 %573
    %v575 = vrcp.pop %v574
    %v576 = vmul.f32 %v571, %v575
    %v577 = vsel %vm141, %v576, 0.0
    %v578 = vrot.slane %v577, 4
    %v579 = vadd.f32 %v577, %v578
    %v580 = vrot.slane %v579, 2
    %v581 = vadd.f32 %v579, %v580
    %v582 = vrot.slane %v581, 1
    %v583 = vadd.f32 %v581, %v582
    %v584 = vmul.f32 %v583, %v235
    %585 = vrot.lane.b32.xlu0 %v130, 48
    %v586 = vpop.permute.xlu0 %585
    %v589 = vsel %vm141, %v584, 0
    %591 = vmatprep.subr.mxu0 0.0
    %592 = vmatpush1.msra.mxu0 %v586
    %593 = vmatprep.subr.mxu0 0.0
    %594 = vmatpush1.msra.mxu0 0.0
    %595 = vmatprep.subr.mxu0 0.0
    %596 = vmatpush1.msra.mxu0 0.0
    %597 = vmatprep.subr.mxu0 0.0
    %598 = vmatpush1.msra.mxu0 0.0
    %599 = vmatprep.subr.mxu0 0.0
    %600 = vmatpush1.msra.mxu0 0.0
    %601 = vmatprep.subr.mxu0 0.0
    %602 = vmatpush1.msra.mxu0 0.0
    %603 = vmatprep.subr.mxu0 0.0
    %604 = vmatpush1.msra.mxu0 0.0
    %605 = vmatprep.subr.mxu0 0.0
    %606 = vmatpush1.msra.mxu0 0.0
    %607 = vmatprep.subr.mxu0 0.0
    %608 = vmatpush1.msra.mxu0 0.0
    %609 = vmatprep.subr.mxu0 0.0
    %610 = vmatpush1.msra.mxu0 0.0
    %611 = vmatprep.subr.mxu0 0.0
    %612 = vmatpush1.msra.mxu0 0.0
    %613 = vmatprep.subr.mxu0 0.0
    %614 = vmatpush1.msra.mxu0 0.0
    %615 = vmatprep.subr.mxu0 0.0
    %616 = vmatpush1.msra.mxu0 0.0
    %617 = vmatprep.subr.mxu0 0.0
    %618 = vmatpush1.msra.mxu0 0.0
    %619 = vmatprep.subr.mxu0 0.0
    %620 = vmatpush1.msra.mxu0 0.0
    %621 = vmatprep.subr.mxu0 0.0
    %622 = vmatpush1.msra.mxu0 0.0
    %623 = vmatprep.subr.mxu0 0.0
    %624 = vmatpush1.msra.mxu0 0.0
    %625 = vmatprep.subr.mxu0 0.0
    %626 = vmatpush1.msra.mxu0 0.0
    %627 = vmatprep.subr.mxu0 0.0
    %628 = vmatpush1.msra.mxu0 0.0
    %629 = vmatprep.subr.mxu0 0.0
    %630 = vmatpush1.msra.mxu0 0.0
    %631 = vmatprep.subr.mxu0 0.0
    %632 = vmatpush1.msra.mxu0 0.0
    %633 = vmatprep.subr.mxu0 0.0
    %634 = vmatpush1.msra.mxu0 0.0
    %635 = vmatprep.subr.mxu0 0.0
    %636 = vmatpush1.msra.mxu0 0.0
    %637 = vmatprep.subr.mxu0 0.0
    %638 = vmatpush1.msra.mxu0 0.0
    %639 = vmatprep.subr.mxu0 0.0
    %640 = vmatpush1.msra.mxu0 0.0
    %641 = vmatprep.subr.mxu0 0.0
    %642 = vmatpush1.msra.mxu0 0.0
    %643 = vmatprep.subr.mxu0 0.0
    %644 = vmatpush1.msra.mxu0 0.0
    %645 = vmatprep.subr.mxu0 0.0
    %646 = vmatpush1.msra.mxu0 0.0
    %647 = vmatprep.subr.mxu0 0.0
    %648 = vmatpush1.msra.mxu0 0.0
    %649 = vmatprep.subr.mxu0 0.0
    %650 = vmatpush1.msra.mxu0 0.0
    %651 = vmatprep.subr.mxu0 0.0
    %652 = vmatpush1.msra.mxu0 0.0
    %653 = vmatprep.subr.mxu0 0.0
    %654 = vmatpush1.msra.mxu0 0.0
    %655 = vmatprep.mubr.f32.mxu0 0.0
    %656 = vmatmul.mubr.f32.gmra.mrb[0].mxu0 %v589
    %v657 = vpop.f32.mrb[0].mxu0
    %v658 = vadd.f32 0.0, %v657
    %v659 = vpop.f32.mrb[0].mxu0
    %660 = vdwg.mxu0
    %661 = vrot.lane.b32.xlu0 %v130, 104
    %v662 = vpop.permute.xlu0 %661
    %663 = vrot.lane.b32.xlu0 %v130, 72
    %v664 = vpop.permute.xlu0 %663
    %v665 = vsel %vm141, %v662, 0
    %v667 = vsel %vm141, %v664, 0
    %669 = vmatprep.subr.mxu0 0.0
    %670 = vmatpush1.xpose.msra.mxu0 %v667
    %671 = vmatprep.subr.mxu0 0.0
    %672 = vmatpush1.xpose.msra.mxu0 0.0
    %673 = vmatprep.subr.mxu0 0.0
    %674 = vmatpush1.xpose.msra.mxu0 0.0
    %675 = vmatprep.subr.mxu0 0.0
    %676 = vmatpush1.xpose.msra.mxu0 0.0
    %677 = vmatprep.subr.mxu0 0.0
    %678 = vmatpush1.xpose.msra.mxu0 0.0
    %679 = vmatprep.subr.mxu0 0.0
    %680 = vmatpush1.xpose.msra.mxu0 0.0
    %681 = vmatprep.subr.mxu0 0.0
    %682 = vmatpush1.xpose.msra.mxu0 0.0
    %683 = vmatprep.subr.mxu0 0.0
    %684 = vmatpush1.xpose.msra.mxu0 0.0
    %685 = vmatprep.subr.mxu0 0.0
    %686 = vmatpush1.xpose.msra.mxu0 0.0
    %687 = vmatprep.subr.mxu0 0.0
    %688 = vmatpush1.xpose.msra.mxu0 0.0
    %689 = vmatprep.subr.mxu0 0.0
    %690 = vmatpush1.xpose.msra.mxu0 0.0
    %691 = vmatprep.subr.mxu0 0.0
    %692 = vmatpush1.xpose.msra.mxu0 0.0
    %693 = vmatprep.subr.mxu0 0.0
    %694 = vmatpush1.xpose.msra.mxu0 0.0
    %695 = vmatprep.subr.mxu0 0.0
    %696 = vmatpush1.xpose.msra.mxu0 0.0
    %697 = vmatprep.subr.mxu0 0.0
    %698 = vmatpush1.xpose.msra.mxu0 0.0
    %699 = vmatprep.subr.mxu0 0.0
    %700 = vmatpush1.xpose.msra.mxu0 0.0
    %701 = vmatprep.subr.mxu0 0.0
    %702 = vmatpush1.xpose.msra.mxu0 0.0
    %703 = vmatprep.subr.mxu0 0.0
    %704 = vmatpush1.xpose.msra.mxu0 0.0
    %705 = vmatprep.subr.mxu0 0.0
    %706 = vmatpush1.xpose.msra.mxu0 0.0
    %707 = vmatprep.subr.mxu0 0.0
    %708 = vmatpush1.xpose.msra.mxu0 0.0
    %709 = vmatprep.subr.mxu0 0.0
    %710 = vmatpush1.xpose.msra.mxu0 0.0
    %711 = vmatprep.subr.mxu0 0.0
    %712 = vmatpush1.xpose.msra.mxu0 0.0
    %713 = vmatprep.subr.mxu0 0.0
    %714 = vmatpush1.xpose.msra.mxu0 0.0
    %715 = vmatprep.subr.mxu0 0.0
    %716 = vmatpush1.xpose.msra.mxu0 0.0
    %717 = vmatprep.subr.mxu0 0.0
    %718 = vmatpush1.xpose.msra.mxu0 0.0
    %719 = vmatprep.subr.mxu0 0.0
    %720 = vmatpush1.xpose.msra.mxu0 0.0
    %721 = vmatprep.subr.mxu0 0.0
    %722 = vmatpush1.xpose.msra.mxu0 0.0
    %723 = vmatprep.subr.mxu0 0.0
    %724 = vmatpush1.xpose.msra.mxu0 0.0
    %725 = vmatprep.subr.mxu0 0.0
    %726 = vmatpush1.xpose.msra.mxu0 0.0
    %727 = vmatprep.subr.mxu0 0.0
    %728 = vmatpush1.xpose.msra.mxu0 0.0
    %729 = vmatprep.subr.mxu0 0.0
    %730 = vmatpush1.xpose.msra.mxu0 0.0
    %731 = vmatprep.subr.mxu0 0.0
    %732 = vmatpush1.xpose.msra.mxu0 0.0
    %733 = vmatprep.mubr.f32.mxu0 0.0
    %734 = vmatmul.mubr.f32.gmra.mrb[0].mxu0 %v665
    %v735 = vpop.f32.mrb[0].mxu0
    %v736 = vadd.f32 0.0, %v735
    %v737 = vpop.f32.mrb[0].mxu0
    %738 = vdwg.mxu0
    %v739 = vmul.f32 %v736, 0.35355338
    %v740 = vsel %vm141, %v739, -inf
    %741 = vmax.xlane.f32.xlu0 %v740
    %v742 = vpop.xlane.xlu0 %741
    %v743 = vsub.f32 %v739, %v742
    %v744 = vmul.f32 %v743, 1.442695
    %v745 = vpow.pop %v744
    %v746 = vsel %vm141, %v745, 0.0
    %747 = vadd.xlane.f32.xlu0 %v746
    %v748 = vpop.xlane.xlu0 %747
    %v749 = vrcp.pop %v748
    %v750 = vmul.f32 %v745, %v749
    %v751 = vsel %vm141, %v750, 0.0
    %v752 = vrot.slane %v751, 4
    %v753 = vadd.f32 %v751, %v752
    %v754 = vrot.slane %v753, 2
    %v755 = vadd.f32 %v753, %v754
    %v756 = vrot.slane %v755, 1
    %v757 = vadd.f32 %v755, %v756
    %v758 = vmul.f32 %v757, %v235
    %759 = vrot.lane.b32.xlu0 %v130, 40
    %v760 = vpop.permute.xlu0 %759
    %v763 = vsel %vm141, %v758, 0
    %765 = vmatprep.subr.mxu0 0.0
    %766 = vmatpush1.msra.mxu0 %v760
    %767 = vmatprep.subr.mxu0 0.0
    %768 = vmatpush1.msra.mxu0 0.0
    %769 = vmatprep.subr.mxu0 0.0
    %770 = vmatpush1.msra.mxu0 0.0
    %771 = vmatprep.subr.mxu0 0.0
    %772 = vmatpush1.msra.mxu0 0.0
    %773 = vmatprep.subr.mxu0 0.0
    %774 = vmatpush1.msra.mxu0 0.0
    %775 = vmatprep.subr.mxu0 0.0
    %776 = vmatpush1.msra.mxu0 0.0
    %777 = vmatprep.subr.mxu0 0.0
    %778 = vmatpush1.msra.mxu0 0.0
    %779 = vmatprep.subr.mxu0 0.0
    %780 = vmatpush1.msra.mxu0 0.0
    %781 = vmatprep.subr.mxu0 0.0
    %782 = vmatpush1.msra.mxu0 0.0
    %783 = vmatprep.subr.mxu0 0.0
    %784 = vmatpush1.msra.mxu0 0.0
    %785 = vmatprep.subr.mxu0 0.0
    %786 = vmatpush1.msra.mxu0 0.0
    %787 = vmatprep.subr.mxu0 0.0
    %788 = vmatpush1.msra.mxu0 0.0
    %789 = vmatprep.subr.mxu0 0.0
    %790 = vmatpush1.msra.mxu0 0.0
    %791 = vmatprep.subr.mxu0 0.0
    %792 = vmatpush1.msra.mxu0 0.0
    %793 = vmatprep.subr.mxu0 0.0
    %794 = vmatpush1.msra.mxu0 0.0
    %795 = vmatprep.subr.mxu0 0.0
    %796 = vmatpush1.msra.mxu0 0.0
    %797 = vmatprep.subr.mxu0 0.0
    %798 = vmatpush1.msra.mxu0 0.0
    %799 = vmatprep.subr.mxu0 0.0
    %800 = vmatpush1.msra.mxu0 0.0
    %801 = vmatprep.subr.mxu0 0.0
    %802 = vmatpush1.msra.mxu0 0.0
    %803 = vmatprep.subr.mxu0 0.0
    %804 = vmatpush1.msra.mxu0 0.0
    %805 = vmatprep.subr.mxu0 0.0
    %806 = vmatpush1.msra.mxu0 0.0
    %807 = vmatprep.subr.mxu0 0.0
    %808 = vmatpush1.msra.mxu0 0.0
    %809 = vmatprep.subr.mxu0 0.0
    %810 = vmatpush1.msra.mxu0 0.0
    %811 = vmatprep.subr.mxu0 0.0
    %812 = vmatpush1.msra.mxu0 0.0
    %813 = vmatprep.subr.mxu0 0.0
    %814 = vmatpush1.msra.mxu0 0.0
    %815 = vmatprep.subr.mxu0 0.0
    %816 = vmatpush1.msra.mxu0 0.0
    %817 = vmatprep.subr.mxu0 0.0
    %818 = vmatpush1.msra.mxu0 0.0
    %819 = vmatprep.subr.mxu0 0.0
    %820 = vmatpush1.msra.mxu0 0.0
    %821 = vmatprep.subr.mxu0 0.0
    %822 = vmatpush1.msra.mxu0 0.0
    %823 = vmatprep.subr.mxu0 0.0
    %824 = vmatpush1.msra.mxu0 0.0
    %825 = vmatprep.subr.mxu0 0.0
    %826 = vmatpush1.msra.mxu0 0.0
    %827 = vmatprep.subr.mxu0 0.0
    %828 = vmatpush1.msra.mxu0 0.0
    %829 = vmatprep.mubr.f32.mxu0 0.0
    %830 = vmatmul.mubr.f32.gmra.mrb[0].mxu0 %v763
    %v831 = vpop.f32.mrb[0].mxu0
    %v832 = vadd.f32 0.0, %v831
    %v833 = vpop.f32.mrb[0].mxu0
    %834 = vdwg.mxu0
    %836 = vrot.lane.b32.xlu0 %v484, 8
    %v837 = vpop.permute.xlu0 %836
    %840 = vrot.lane.b32.xlu0 %v658, 16
    %v841 = vpop.permute.xlu0 %840
    %844 = vrot.lane.b32.xlu0 %v832, 24
    %v845 = vpop.permute.xlu0 %844
    %v847 = vsel %vm141, %v310, %v837
    %vm848 = vcmask 130048
    %v849 = vsel %vm848, %v847, %v841
    %vm850 = vcmask 195584
    %v851 = vsel %vm850, %v849, %v845
    %853 = vrot.lane.b32.xlu0 %v135, 96
    %v854 = vpop.permute.xlu0 %853
    %v855 = vsel %vm141, %v135, 0
    %v857 = vsel %vm141, %v854, 0
    %859 = vmatprep.subr.mxu0 0.0
    %860 = vmatpush1.xpose.msra.mxu0 %v857
    %861 = vmatprep.subr.mxu0 0.0
    %862 = vmatpush1.xpose.msra.mxu0 0.0
    %863 = vmatprep.subr.mxu0 0.0
    %864 = vmatpush1.xpose.msra.mxu0 0.0
    %865 = vmatprep.subr.mxu0 0.0
    %866 = vmatpush1.xpose.msra.mxu0 0.0
    %867 = vmatprep.subr.mxu0 0.0
    %868 = vmatpush1.xpose.msra.mxu0 0.0
    %869 = vmatprep.subr.mxu0 0.0
    %870 = vmatpush1.xpose.msra.mxu0 0.0
    %871 = vmatprep.subr.mxu0 0.0
    %872 = vmatpush1.xpose.msra.mxu0 0.0
    %873 = vmatprep.subr.mxu0 0.0
    %874 = vmatpush1.xpose.msra.mxu0 0.0
    %875 = vmatprep.subr.mxu0 0.0
    %876 = vmatpush1.xpose.msra.mxu0 0.0
    %877 = vmatprep.subr.mxu0 0.0
    %878 = vmatpush1.xpose.msra.mxu0 0.0
    %879 = vmatprep.subr.mxu0 0.0
    %880 = vmatpush1.xpose.msra.mxu0 0.0
    %881 = vmatprep.subr.mxu0 0.0
    %882 = vmatpush1.xpose.msra.mxu0 0.0
    %883 = vmatprep.subr.mxu0 0.0
    %884 = vmatpush1.xpose.msra.mxu0 0.0
    %885 = vmatprep.subr.mxu0 0.0
    %886 = vmatpush1.xpose.msra.mxu0 0.0
    %887 = vmatprep.subr.mxu0 0.0
    %888 = vmatpush1.xpose.msra.mxu0 0.0
    %889 = vmatprep.subr.mxu0 0.0
    %890 = vmatpush1.xpose.msra.mxu0 0.0
    %891 = vmatprep.subr.mxu0 0.0
    %892 = vmatpush1.xpose.msra.mxu0 0.0
    %893 = vmatprep.subr.mxu0 0.0
    %894 = vmatpush1.xpose.msra.mxu0 0.0
    %895 = vmatprep.subr.mxu0 0.0
    %896 = vmatpush1.xpose.msra.mxu0 0.0
    %897 = vmatprep.subr.mxu0 0.0
    %898 = vmatpush1.xpose.msra.mxu0 0.0
    %899 = vmatprep.subr.mxu0 0.0
    %900 = vmatpush1.xpose.msra.mxu0 0.0
    %901 = vmatprep.subr.mxu0 0.0
    %902 = vmatpush1.xpose.msra.mxu0 0.0
    %903 = vmatprep.subr.mxu0 0.0
    %904 = vmatpush1.xpose.msra.mxu0 0.0
    %905 = vmatprep.subr.mxu0 0.0
    %906 = vmatpush1.xpose.msra.mxu0 0.0
    %907 = vmatprep.subr.mxu0 0.0
    %908 = vmatpush1.xpose.msra.mxu0 0.0
    %909 = vmatprep.subr.mxu0 0.0
    %910 = vmatpush1.xpose.msra.mxu0 0.0
    %911 = vmatprep.subr.mxu0 0.0
    %912 = vmatpush1.xpose.msra.mxu0 0.0
    %913 = vmatprep.subr.mxu0 0.0
    %914 = vmatpush1.xpose.msra.mxu0 0.0
    %915 = vmatprep.subr.mxu0 0.0
    %916 = vmatpush1.xpose.msra.mxu0 0.0
    %917 = vmatprep.subr.mxu0 0.0
    %918 = vmatpush1.xpose.msra.mxu0 0.0
    %919 = vmatprep.subr.mxu0 0.0
    %920 = vmatpush1.xpose.msra.mxu0 0.0
    %921 = vmatprep.subr.mxu0 0.0
    %922 = vmatpush1.xpose.msra.mxu0 0.0
    %923 = vmatprep.mubr.f32.mxu0 0.0
    %924 = vmatmul.mubr.f32.gmra.mrb[0].mxu0 %v855
    %v925 = vpop.f32.mrb[0].mxu0
    %v926 = vadd.f32 0.0, %v925
    %v927 = vpop.f32.mrb[0].mxu0
    %928 = vdwg.mxu0
    %v929 = vmul.f32 %v926, 0.35355338
    %v930 = vsel %vm141, %v929, -inf
    %931 = vmax.xlane.f32.xlu0 %v930
    %v932 = vpop.xlane.xlu0 %931
    %v933 = vsub.f32 %v929, %v932
    %v934 = vmul.f32 %v933, 1.442695
    %v935 = vpow.pop %v934
    %v936 = vsel %vm141, %v935, 0.0
    %937 = vadd.xlane.f32.xlu0 %v936
    %v938 = vpop.xlane.xlu0 %937
    %v939 = vrcp.pop %v938
    %v940 = vmul.f32 %v935, %v939
    %v941 = vsel %vm141, %v940, 0.0
    %v942 = vrot.slane %v941, 4
    %v943 = vadd.f32 %v941, %v942
    %v944 = vrot.slane %v943, 2
    %v945 = vadd.f32 %v943, %v944
    %v946 = vrot.slane %v945, 1
    %v947 = vadd.f32 %v945, %v946
    %v948 = vmul.f32 %v947, %v235
    %949 = vrot.lane.b32.xlu0 %v135, 64
    %v950 = vpop.permute.xlu0 %949
    %v953 = vsel %vm141, %v948, 0
    %955 = vmatprep.subr.mxu0 0.0
    %956 = vmatpush1.msra.mxu0 %v950
    %957 = vmatprep.subr.mxu0 0.0
    %958 = vmatpush1.msra.mxu0 0.0
    %959 = vmatprep.subr.mxu0 0.0
    %960 = vmatpush1.msra.mxu0 0.0
    %961 = vmatprep.subr.mxu0 0.0
    %962 = vmatpush1.msra.mxu0 0.0
    %963 = vmatprep.subr.mxu0 0.0
    %964 = vmatpush1.msra.mxu0 0.0
    %965 = vmatprep.subr.mxu0 0.0
    %966 = vmatpush1.msra.mxu0 0.0
    %967 = vmatprep.subr.mxu0 0.0
    %968 = vmatpush1.msra.mxu0 0.0
    %969 = vmatprep.subr.mxu0 0.0
    %970 = vmatpush1.msra.mxu0 0.0
    %971 = vmatprep.subr.mxu0 0.0
    %972 = vmatpush1.msra.mxu0 0.0
    %973 = vmatprep.subr.mxu0 0.0
    %974 = vmatpush1.msra.mxu0 0.0
    %975 = vmatprep.subr.mxu0 0.0
    %976 = vmatpush1.msra.mxu0 0.0
    %977 = vmatprep.subr.mxu0 0.0
    %978 = vmatpush1.msra.mxu0 0.0
    %979 = vmatprep.subr.mxu0 0.0
    %980 = vmatpush1.msra.mxu0 0.0
    %981 = vmatprep.subr.mxu0 0.0
    %982 = vmatpush1.msra.mxu0 0.0
    %983 = vmatprep.subr.mxu0 0.0
    %984 = vmatpush1.msra.mxu0 0.0
    %985 = vmatprep.subr.mxu0 0.0
    %986 = vmatpush1.msra.mxu0 0.0
    %987 = vmatprep.subr.mxu0 0.0
    %988 = vmatpush1.msra.mxu0 0.0
    %989 = vmatprep.subr.mxu0 0.0
    %990 = vmatpush1.msra.mxu0 0.0
    %991 = vmatprep.subr.mxu0 0.0
    %992 = vmatpush1.msra.mxu0 0.0
    %993 = vmatprep.subr.mxu0 0.0
    %994 = vmatpush1.msra.mxu0 0.0
    %995 = vmatprep.subr.mxu0 0.0
    %996 = vmatpush1.msra.mxu0 0.0
    %997 = vmatprep.subr.mxu0 0.0
    %998 = vmatpush1.msra.mxu0 0.0
    %999 = vmatprep.subr.mxu0 0.0
    %1000 = vmatpush1.msra.mxu0 0.0
    %1001 = vmatprep.subr.mxu0 0.0
    %1002 = vmatpush1.msra.mxu0 0.0
    %1003 = vmatprep.subr.mxu0 0.0
    %1004 = vmatpush1.msra.mxu0 0.0
    %1005 = vmatprep.subr.mxu0 0.0
    %1006 = vmatpush1.msra.mxu0 0.0
    %1007 = vmatprep.subr.mxu0 0.0
    %1008 = vmatpush1.msra.mxu0 0.0
    %1009 = vmatprep.subr.mxu0 0.0
    %1010 = vmatpush1.msra.mxu0 0.0
    %1011 = vmatprep.subr.mxu0 0.0
    %1012 = vmatpush1.msra.mxu0 0.0
    %1013 = vmatprep.subr.mxu0 0.0
    %1014 = vmatpush1.msra.mxu0 0.0
    %1015 = vmatprep.subr.mxu0 0.0
    %1016 = vmatpush1.msra.mxu0 0.0
    %1017 = vmatprep.subr.mxu0 0.0
    %1018 = vmatpush1.msra.mxu0 0.0
    %1019 = vmatprep.mubr.f32.mxu0 0.0
    %1020 = vmatmul.mubr.f32.gmra.mrb[0].mxu0 %v953
    %v1021 = vpop.f32.mrb[0].mxu0
    %v1022 = vadd.f32 0.0, %v1021
    %v1023 = vpop.f32.mrb[0].mxu0
    %1024 = vdwg.mxu0
    %1025 = vrot.lane.b32.xlu0 %v135, 120
    %v1026 = vpop.permute.xlu0 %1025
    %1027 = vrot.lane.b32.xlu0 %v135, 88
    %v1028 = vpop.permute.xlu0 %1027
    %v1029 = vsel %vm141, %v1026, 0
    %v1031 = vsel %vm141, %v1028, 0
    %1033 = vmatprep.subr.mxu0 0.0
    %1034 = vmatpush1.xpose.msra.mxu0 %v1031
    %1035 = vmatprep.subr.mxu0 0.0
    %1036 = vmatpush1.xpose.msra.mxu0 0.0
    %1037 = vmatprep.subr.mxu0 0.0
    %1038 = vmatpush1.xpose.msra.mxu0 0.0
    %1039 = vmatprep.subr.mxu0 0.0
    %1040 = vmatpush1.xpose.msra.mxu0 0.0
    %1041 = vmatprep.subr.mxu0 0.0
    %1042 = vmatpush1.xpose.msra.mxu0 0.0
    %1043 = vmatprep.subr.mxu0 0.0
    %1044 = vmatpush1.xpose.msra.mxu0 0.0
    %1045 = vmatprep.subr.mxu0 0.0
    %1046 = vmatpush1.xpose.msra.mxu0 0.0
    %1047 = vmatprep.subr.mxu0 0.0
    %1048 = vmatpush1.xpose.msra.mxu0 0.0
    %1049 = vmatprep.subr.mxu0 0.0
    %1050 = vmatpush1.xpose.msra.mxu0 0.0
    %1051 = vmatprep.subr.mxu0 0.0
    %1052 = vmatpush1.xpose.msra.mxu0 0.0
    %1053 = vmatprep.subr.mxu0 0.0
    %1054 = vmatpush1.xpose.msra.mxu0 0.0
    %1055 = vmatprep.subr.mxu0 0.0
    %1056 = vmatpush1.xpose.msra.mxu0 0.0
    %1057 = vmatprep.subr.mxu0 0.0
    %1058 = vmatpush1.xpose.msra.mxu0 0.0
    %1059 = vmatprep.subr.mxu0 0.0
    %1060 = vmatpush1.xpose.msra.mxu0 0.0
    %1061 = vmatprep.subr.mxu0 0.0
    %1062 = vmatpush1.xpose.msra.mxu0 0.0
    %1063 = vmatprep.subr.mxu0 0.0
    %1064 = vmatpush1.xpose.msra.mxu0 0.0
    %1065 = vmatprep.subr.mxu0 0.0
    %1066 = vmatpush1.xpose.msra.mxu0 0.0
    %1067 = vmatprep.subr.mxu0 0.0
    %1068 = vmatpush1.xpose.msra.mxu0 0.0
    %1069 = vmatprep.subr.mxu0 0.0
    %1070 = vmatpush1.xpose.msra.mxu0 0.0
    %1071 = vmatprep.subr.mxu0 0.0
    %1072 = vmatpush1.xpose.msra.mxu0 0.0
    %1073 = vmatprep.subr.mxu0 0.0
    %1074 = vmatpush1.xpose.msra.mxu0 0.0
    %1075 = vmatprep.subr.mxu0 0.0
    %1076 = vmatpush1.xpose.msra.mxu0 0.0
    %1077 = vmatprep.subr.mxu0 0.0
    %1078 = vmatpush1.xpose.msra.mxu0 0.0
    %1079 = vmatprep.subr.mxu0 0.0
    %1080 = vmatpush1.xpose.msra.mxu0 0.0
    %1081 = vmatprep.subr.mxu0 0.0
    %1082 = vmatpush1.xpose.msra.mxu0 0.0
    %1083 = vmatprep.subr.mxu0 0.0
    %1084 = vmatpush1.xpose.msra.mxu0 0.0
    %1085 = vmatprep.subr.mxu0 0.0
    %1086 = vmatpush1.xpose.msra.mxu0 0.0
    %1087 = vmatprep.subr.mxu0 0.0
    %1088 = vmatpush1.xpose.msra.mxu0 0.0
    %1089 = vmatprep.subr.mxu0 0.0
    %1090 = vmatpush1.xpose.msra.mxu0 0.0
    %1091 = vmatprep.subr.mxu0 0.0
    %1092 = vmatpush1.xpose.msra.mxu0 0.0
    %1093 = vmatprep.subr.mxu0 0.0
    %1094 = vmatpush1.xpose.msra.mxu0 0.0
    %1095 = vmatprep.subr.mxu0 0.0
    %1096 = vmatpush1.xpose.msra.mxu0 0.0
    %1097 = vmatprep.mubr.f32.mxu0 0.0
    %1098 = vmatmul.mubr.f32.gmra.mrb[0].mxu0 %v1029
    %v1099 = vpop.f32.mrb[0].mxu0
    %v1100 = vadd.f32 0.0, %v1099
    %v1101 = vpop.f32.mrb[0].mxu0
    %1102 = vdwg.mxu0
    %v1103 = vmul.f32 %v1100, 0.35355338
    %v1104 = vsel %vm141, %v1103, -inf
    %1105 = vmax.xlane.f32.xlu0 %v1104
    %v1106 = vpop.xlane.xlu0 %1105
    %v1107 = vsub.f32 %v1103, %v1106
    %v1108 = vmul.f32 %v1107, 1.442695
    %v1109 = vpow.pop %v1108
    %v1110 = vsel %vm141, %v1109, 0.0
    %1111 = vadd.xlane.f32.xlu0 %v1110
    %v1112 = vpop.xlane.xlu0 %1111
    %v1113 = vrcp.pop %v1112
    %v1114 = vmul.f32 %v1109, %v1113
    %v1115 = vsel %vm141, %v1114, 0.0
    %v1116 = vrot.slane %v1115, 4
    %v1117 = vadd.f32 %v1115, %v1116
    %v1118 = vrot.slane %v1117, 2
    %v1119 = vadd.f32 %v1117, %v1118
    %v1120 = vrot.slane %v1119, 1
    %v1121 = vadd.f32 %v1119, %v1120
    %v1122 = vmul.f32 %v1121, %v235
    %1123 = vrot.lane.b32.xlu0 %v135, 56
    %v1124 = vpop.permute.xlu0 %1123
    %v1127 = vsel %vm141, %v1122, 0
    %1129 = vmatprep.subr.mxu0 0.0
    %1130 = vmatpush1.msra.mxu0 %v1124
    %1131 = vmatprep.subr.mxu0 0.0
    %1132 = vmatpush1.msra.mxu0 0.0
    %1133 = vmatprep.subr.mxu0 0.0
    %1134 = vmatpush1.msra.mxu0 0.0
    %1135 = vmatprep.subr.mxu0 0.0
    %1136 = vmatpush1.msra.mxu0 0.0
    %1137 = vmatprep.subr.mxu0 0.0
    %1138 = vmatpush1.msra.mxu0 0.0
    %1139 = vmatprep.subr.mxu0 0.0
    %1140 = vmatpush1.msra.mxu0 0.0
    %1141 = vmatprep.subr.mxu0 0.0
    %1142 = vmatpush1.msra.mxu0 0.0
    %1143 = vmatprep.subr.mxu0 0.0
    %1144 = vmatpush1.msra.mxu0 0.0
    %1145 = vmatprep.subr.mxu0 0.0
    %1146 = vmatpush1.msra.mxu0 0.0
    %1147 = vmatprep.subr.mxu0 0.0
    %1148 = vmatpush1.msra.mxu0 0.0
    %1149 = vmatprep.subr.mxu0 0.0
    %1150 = vmatpush1.msra.mxu0 0.0
    %1151 = vmatprep.subr.mxu0 0.0
    %1152 = vmatpush1.msra.mxu0 0.0
    %1153 = vmatprep.subr.mxu0 0.0
    %1154 = vmatpush1.msra.mxu0 0.0
    %1155 = vmatprep.subr.mxu0 0.0
    %1156 = vmatpush1.msra.mxu0 0.0
    %1157 = vmatprep.subr.mxu0 0.0
    %1158 = vmatpush1.msra.mxu0 0.0
    %1159 = vmatprep.subr.mxu0 0.0
    %1160 = vmatpush1.msra.mxu0 0.0
    %1161 = vmatprep.subr.mxu0 0.0
    %1162 = vmatpush1.msra.mxu0 0.0
    %1163 = vmatprep.subr.mxu0 0.0
    %1164 = vmatpush1.msra.mxu0 0.0
    %1165 = vmatprep.subr.mxu0 0.0
    %1166 = vmatpush1.msra.mxu0 0.0
    %1167 = vmatprep.subr.mxu0 0.0
    %1168 = vmatpush1.msra.mxu0 0.0
    %1169 = vmatprep.subr.mxu0 0.0
    %1170 = vmatpush1.msra.mxu0 0.0
    %1171 = vmatprep.subr.mxu0 0.0
    %1172 = vmatpush1.msra.mxu0 0.0
    %1173 = vmatprep.subr.mxu0 0.0
    %1174 = vmatpush1.msra.mxu0 0.0
    %1175 = vmatprep.subr.mxu0 0.0
    %1176 = vmatpush1.msra.mxu0 0.0
    %1177 = vmatprep.subr.mxu0 0.0
    %1178 = vmatpush1.msra.mxu0 0.0
    %1179 = vmatprep.subr.mxu0 0.0
    %1180 = vmatpush1.msra.mxu0 0.0
    %1181 = vmatprep.subr.mxu0 0.0
    %1182 = vmatpush1.msra.mxu0 0.0
    %1183 = vmatprep.subr.mxu0 0.0
    %1184 = vmatpush1.msra.mxu0 0.0
    %1185 = vmatprep.subr.mxu0 0.0
    %1186 = vmatpush1.msra.mxu0 0.0
    %1187 = vmatprep.subr.mxu0 0.0
    %1188 = vmatpush1.msra.mxu0 0.0
    %1189 = vmatprep.subr.mxu0 0.0
    %1190 = vmatpush1.msra.mxu0 0.0
    %1191 = vmatprep.subr.mxu0 0.0
    %1192 = vmatpush1.msra.mxu0 0.0
    %1193 = vmatprep.mubr.f32.mxu0 0.0
    %1194 = vmatmul.mubr.f32.gmra.mrb[0].mxu0 %v1127
    %v1195 = vpop.f32.mrb[0].mxu0
    %v1196 = vadd.f32 0.0, %v1195
    %v1197 = vpop.f32.mrb[0].mxu0
    %1198 = vdwg.mxu0
    %1199 = vrot.lane.b32.xlu0 %v135, 112
    %v1200 = vpop.permute.xlu0 %1199
    %1201 = vrot.lane.b32.xlu0 %v135, 80
    %v1202 = vpop.permute.xlu0 %1201
    %v1203 = vsel %vm141, %v1200, 0
    %v1205 = vsel %vm141, %v1202, 0
    %1207 = vmatprep.subr.mxu0 0.0
    %1208 = vmatpush1.xpose.msra.mxu0 %v1205
    %1209 = vmatprep.subr.mxu0 0.0
    %1210 = vmatpush1.xpose.msra.mxu0 0.0
    %1211 = vmatprep.subr.mxu0 0.0
    %1212 = vmatpush1.xpose.msra.mxu0 0.0
    %1213 = vmatprep.subr.mxu0 0.0
    %1214 = vmatpush1.xpose.msra.mxu0 0.0
    %1215 = vmatprep.subr.mxu0 0.0
    %1216 = vmatpush1.xpose.msra.mxu0 0.0
    %1217 = vmatprep.subr.mxu0 0.0
    %1218 = vmatpush1.xpose.msra.mxu0 0.0
    %1219 = vmatprep.subr.mxu0 0.0
    %1220 = vmatpush1.xpose.msra.mxu0 0.0
    %1221 = vmatprep.subr.mxu0 0.0
    %1222 = vmatpush1.xpose.msra.mxu0 0.0
    %1223 = vmatprep.subr.mxu0 0.0
    %1224 = vmatpush1.xpose.msra.mxu0 0.0
    %1225 = vmatprep.subr.mxu0 0.0
    %1226 = vmatpush1.xpose.msra.mxu0 0.0
    %1227 = vmatprep.subr.mxu0 0.0
    %1228 = vmatpush1.xpose.msra.mxu0 0.0
    %1229 = vmatprep.subr.mxu0 0.0
    %1230 = vmatpush1.xpose.msra.mxu0 0.0
    %1231 = vmatprep.subr.mxu0 0.0
    %1232 = vmatpush1.xpose.msra.mxu0 0.0
    %1233 = vmatprep.subr.mxu0 0.0
    %1234 = vmatpush1.xpose.msra.mxu0 0.0
    %1235 = vmatprep.subr.mxu0 0.0
    %1236 = vmatpush1.xpose.msra.mxu0 0.0
    %1237 = vmatprep.subr.mxu0 0.0
    %1238 = vmatpush1.xpose.msra.mxu0 0.0
    %1239 = vmatprep.subr.mxu0 0.0
    %1240 = vmatpush1.xpose.msra.mxu0 0.0
    %1241 = vmatprep.subr.mxu0 0.0
    %1242 = vmatpush1.xpose.msra.mxu0 0.0
    %1243 = vmatprep.subr.mxu0 0.0
    %1244 = vmatpush1.xpose.msra.mxu0 0.0
    %1245 = vmatprep.subr.mxu0 0.0
    %1246 = vmatpush1.xpose.msra.mxu0 0.0
    %1247 = vmatprep.subr.mxu0 0.0
    %1248 = vmatpush1.xpose.msra.mxu0 0.0
    %1249 = vmatprep.subr.mxu0 0.0
    %1250 = vmatpush1.xpose.msra.mxu0 0.0
    %1251 = vmatprep.subr.mxu0 0.0
    %1252 = vmatpush1.xpose.msra.mxu0 0.0
    %1253 = vmatprep.subr.mxu0 0.0
    %1254 = vmatpush1.xpose.msra.mxu0 0.0
    %1255 = vmatprep.subr.mxu0 0.0
    %1256 = vmatpush1.xpose.msra.mxu0 0.0
    %1257 = vmatprep.subr.mxu0 0.0
    %1258 = vmatpush1.xpose.msra.mxu0 0.0
    %1259 = vmatprep.subr.mxu0 0.0
    %1260 = vmatpush1.xpose.msra.mxu0 0.0
    %1261 = vmatprep.subr.mxu0 0.0
    %1262 = vmatpush1.xpose.msra.mxu0 0.0
    %1263 = vmatprep.subr.mxu0 0.0
    %1264 = vmatpush1.xpose.msra.mxu0 0.0
    %1265 = vmatprep.subr.mxu0 0.0
    %1266 = vmatpush1.xpose.msra.mxu0 0.0
    %1267 = vmatprep.subr.mxu0 0.0
    %1268 = vmatpush1.xpose.msra.mxu0 0.0
    %1269 = vmatprep.subr.mxu0 0.0
    %1270 = vmatpush1.xpose.msra.mxu0 0.0
    %1271 = vmatprep.mubr.f32.mxu0 0.0
    %1272 = vmatmul.mubr.f32.gmra.mrb[0].mxu0 %v1203
    %v1273 = vpop.f32.mrb[0].mxu0
    %v1274 = vadd.f32 0.0, %v1273
    %v1275 = vpop.f32.mrb[0].mxu0
    %1276 = vdwg.mxu0
    %v1277 = vmul.f32 %v1274, 0.35355338
    %v1278 = vsel %vm141, %v1277, -inf
    %1279 = vmax.xlane.f32.xlu0 %v1278
    %v1280 = vpop.xlane.xlu0 %1279
    %v1281 = vsub.f32 %v1277, %v1280
    %v1282 = vmul.f32 %v1281, 1.442695
    %v1283 = vpow.pop %v1282
    %v1284 = vsel %vm141, %v1283, 0.0
    %1285 = vadd.xlane.f32.xlu0 %v1284
    %v1286 = vpop.xlane.xlu0 %1285
    %v1287 = vrcp.pop %v1286
    %v1288 = vmul.f32 %v1283, %v1287
    %v1289 = vsel %vm141, %v1288, 0.0
    %v1290 = vrot.slane %v1289, 4
    %v1291 = vadd.f32 %v1289, %v1290
    %v1292 = vrot.slane %v1291, 2
    %v1293 = vadd.f32 %v1291, %v1292
    %v1294 = vrot.slane %v1293, 1
    %v1295 = vadd.f32 %v1293, %v1294
    %v1296 = vmul.f32 %v1295, %v235
    %1297 = vrot.lane.b32.xlu0 %v135, 48
    %v1298 = vpop.permute.xlu0 %1297
    %v1301 = vsel %vm141, %v1296, 0
    %1303 = vmatprep.subr.mxu0 0.0
    %1304 = vmatpush1.msra.mxu0 %v1298
    %1305 = vmatprep.subr.mxu0 0.0
    %1306 = vmatpush1.msra.mxu0 0.0
    %1307 = vmatprep.subr.mxu0 0.0
    %1308 = vmatpush1.msra.mxu0 0.0
    %1309 = vmatprep.subr.mxu0 0.0
    %1310 = vmatpush1.msra.mxu0 0.0
    %1311 = vmatprep.subr.mxu0 0.0
    %1312 = vmatpush1.msra.mxu0 0.0
    %1313 = vmatprep.subr.mxu0 0.0
    %1314 = vmatpush1.msra.mxu0 0.0
    %1315 = vmatprep.subr.mxu0 0.0
    %1316 = vmatpush1.msra.mxu0 0.0
    %1317 = vmatprep.subr.mxu0 0.0
    %1318 = vmatpush1.msra.mxu0 0.0
    %1319 = vmatprep.subr.mxu0 0.0
    %1320 = vmatpush1.msra.mxu0 0.0
    %1321 = vmatprep.subr.mxu0 0.0
    %1322 = vmatpush1.msra.mxu0 0.0
    %1323 = vmatprep.subr.mxu0 0.0
    %1324 = vmatpush1.msra.mxu0 0.0
    %1325 = vmatprep.subr.mxu0 0.0
    %1326 = vmatpush1.msra.mxu0 0.0
    %1327 = vmatprep.subr.mxu0 0.0
    %1328 = vmatpush1.msra.mxu0 0.0
    %1329 = vmatprep.subr.mxu0 0.0
    %1330 = vmatpush1.msra.mxu0 0.0
    %1331 = vmatprep.subr.mxu0 0.0
    %1332 = vmatpush1.msra.mxu0 0.0
    %1333 = vmatprep.subr.mxu0 0.0
    %1334 = vmatpush1.msra.mxu0 0.0
    %1335 = vmatprep.subr.mxu0 0.0
    %1336 = vmatpush1.msra.mxu0 0.0
    %1337 = vmatprep.subr.mxu0 0.0
    %1338 = vmatpush1.msra.mxu0 0.0
    %1339 = vmatprep.subr.mxu0 0.0
    %1340 = vmatpush1.msra.mxu0 0.0
    %1341 = vmatprep.subr.mxu0 0.0
    %1342 = vmatpush1.msra.mxu0 0.0
    %1343 = vmatprep.subr.mxu0 0.0
    %1344 = vmatpush1.msra.mxu0 0.0
    %1345 = vmatprep.subr.mxu0 0.0
    %1346 = vmatpush1.msra.mxu0 0.0
    %1347 = vmatprep.subr.mxu0 0.0
    %1348 = vmatpush1.msra.mxu0 0.0
    %1349 = vmatprep.subr.mxu0 0.0
    %1350 = vmatpush1.msra.mxu0 0.0
    %1351 = vmatprep.subr.mxu0 0.0
    %1352 = vmatpush1.msra.mxu0 0.0
    %1353 = vmatprep.subr.mxu0 0.0
    %1354 = vmatpush1.msra.mxu0 0.0
    %1355 = vmatprep.subr.mxu0 0.0
    %1356 = vmatpush1.msra.mxu0 0.0
    %1357 = vmatprep.subr.mxu0 0.0
    %1358 = vmatpush1.msra.mxu0 0.0
    %1359 = vmatprep.subr.mxu0 0.0
    %1360 = vmatpush1.msra.mxu0 0.0
    %1361 = vmatprep.subr.mxu0 0.0
    %1362 = vmatpush1.msra.mxu0 0.0
    %1363 = vmatprep.subr.mxu0 0.0
    %1364 = vmatpush1.msra.mxu0 0.0
    %1365 = vmatprep.subr.mxu0 0.0
    %1366 = vmatpush1.msra.mxu0 0.0
    %1367 = vmatprep.mubr.f32.mxu0 0.0
    %1368 = vmatmul.mubr.f32.gmra.mrb[0].mxu0 %v1301
    %v1369 = vpop.f32.mrb[0].mxu0
    %v1370 = vadd.f32 0.0, %v1369
    %v1371 = vpop.f32.mrb[0].mxu0
    %1372 = vdwg.mxu0
    %1373 = vrot.lane.b32.xlu0 %v135, 104
    %v1374 = vpop.permute.xlu0 %1373
    %1375 = vrot.lane.b32.xlu0 %v135, 72
    %v1376 = vpop.permute.xlu0 %1375
    %v1377 = vsel %vm141, %v1374, 0
    %v1379 = vsel %vm141, %v1376, 0
    %1381 = vmatprep.subr.mxu0 0.0
    %1382 = vmatpush1.xpose.msra.mxu0 %v1379
    %1383 = vmatprep.subr.mxu0 0.0
    %1384 = vmatpush1.xpose.msra.mxu0 0.0
    %1385 = vmatprep.subr.mxu0 0.0
    %1386 = vmatpush1.xpose.msra.mxu0 0.0
    %1387 = vmatprep.subr.mxu0 0.0
    %1388 = vmatpush1.xpose.msra.mxu0 0.0
    %1389 = vmatprep.subr.mxu0 0.0
    %1390 = vmatpush1.xpose.msra.mxu0 0.0
    %1391 = vmatprep.subr.mxu0 0.0
    %1392 = vmatpush1.xpose.msra.mxu0 0.0
    %1393 = vmatprep.subr.mxu0 0.0
    %1394 = vmatpush1.xpose.msra.mxu0 0.0
    %1395 = vmatprep.subr.mxu0 0.0
    %1396 = vmatpush1.xpose.msra.mxu0 0.0
    %1397 = vmatprep.subr.mxu0 0.0
    %1398 = vmatpush1.xpose.msra.mxu0 0.0
    %1399 = vmatprep.subr.mxu0 0.0
    %1400 = vmatpush1.xpose.msra.mxu0 0.0
    %1401 = vmatprep.subr.mxu0 0.0
    %1402 = vmatpush1.xpose.msra.mxu0 0.0
    %1403 = vmatprep.subr.mxu0 0.0
    %1404 = vmatpush1.xpose.msra.mxu0 0.0
    %1405 = vmatprep.subr.mxu0 0.0
    %1406 = vmatpush1.xpose.msra.mxu0 0.0
    %1407 = vmatprep.subr.mxu0 0.0
    %1408 = vmatpush1.xpose.msra.mxu0 0.0
    %1409 = vmatprep.subr.mxu0 0.0
    %1410 = vmatpush1.xpose.msra.mxu0 0.0
    %1411 = vmatprep.subr.mxu0 0.0
    %1412 = vmatpush1.xpose.msra.mxu0 0.0
    %1413 = vmatprep.subr.mxu0 0.0
    %1414 = vmatpush1.xpose.msra.mxu0 0.0
    %1415 = vmatprep.subr.mxu0 0.0
    %1416 = vmatpush1.xpose.msra.mxu0 0.0
    %1417 = vmatprep.subr.mxu0 0.0
    %1418 = vmatpush1.xpose.msra.mxu0 0.0
    %1419 = vmatprep.subr.mxu0 0.0
    %1420 = vmatpush1.xpose.msra.mxu0 0.0
    %1421 = vmatprep.subr.mxu0 0.0
    %1422 = vmatpush1.xpose.msra.mxu0 0.0
    %1423 = vmatprep.subr.mxu0 0.0
    %1424 = vmatpush1.xpose.msra.mxu0 0.0
    %1425 = vmatprep.subr.mxu0 0.0
    %1426 = vmatpush1.xpose.msra.mxu0 0.0
    %1427 = vmatprep.subr.mxu0 0.0
    %1428 = vmatpush1.xpose.msra.mxu0 0.0
    %1429 = vmatprep.subr.mxu0 0.0
    %1430 = vmatpush1.xpose.msra.mxu0 0.0
    %1431 = vmatprep.subr.mxu0 0.0
    %1432 = vmatpush1.xpose.msra.mxu0 0.0
    %1433 = vmatprep.subr.mxu0 0.0
    %1434 = vmatpush1.xpose.msra.mxu0 0.0
    %1435 = vmatprep.subr.mxu0 0.0
    %1436 = vmatpush1.xpose.msra.mxu0 0.0
    %1437 = vmatprep.subr.mxu0 0.0
    %1438 = vmatpush1.xpose.msra.mxu0 0.0
    %1439 = vmatprep.subr.mxu0 0.0
    %1440 = vmatpush1.xpose.msra.mxu0 0.0
    %1441 = vmatprep.subr.mxu0 0.0
    %1442 = vmatpush1.xpose.msra.mxu0 0.0
    %1443 = vmatprep.subr.mxu0 0.0
    %1444 = vmatpush1.xpose.msra.mxu0 0.0
    %1445 = vmatprep.mubr.f32.mxu0 0.0
    %1446 = vmatmul.mubr.f32.gmra.mrb[0].mxu0 %v1377
    %v1447 = vpop.f32.mrb[0].mxu0
    %v1448 = vadd.f32 0.0, %v1447
    %v1449 = vpop.f32.mrb[0].mxu0
    %1450 = vdwg.mxu0
    %v1451 = vmul.f32 %v1448, 0.35355338
    %v1452 = vsel %vm141, %v1451, -inf
    %1453 = vmax.xlane.f32.xlu0 %v1452
    %v1454 = vpop.xlane.xlu0 %1453
    %v1455 = vsub.f32 %v1451, %v1454
    %v1456 = vmul.f32 %v1455, 1.442695
    %v1457 = vpow.pop %v1456
    %v1458 = vsel %vm141, %v1457, 0.0
    %1459 = vadd.xlane.f32.xlu0 %v1458
    %v1460 = vpop.xlane.xlu0 %1459
    %v1461 = vrcp.pop %v1460
    %v1462 = vmul.f32 %v1457, %v1461
    %v1463 = vsel %vm141, %v1462, 0.0
    %v1464 = vrot.slane %v1463, 4
    %v1465 = vadd.f32 %v1463, %v1464
    %v1466 = vrot.slane %v1465, 2
    %v1467 = vadd.f32 %v1465, %v1466
    %v1468 = vrot.slane %v1467, 1
    %v1469 = vadd.f32 %v1467, %v1468
    %v1470 = vmul.f32 %v1469, %v235
    %1471 = vrot.lane.b32.xlu0 %v135, 40
    %v1472 = vpop.permute.xlu0 %1471
    %v1475 = vsel %vm141, %v1470, 0
    %1477 = vmatprep.subr.mxu0 0.0
    %1478 = vmatpush1.msra.mxu0 %v1472
    %1479 = vmatprep.subr.mxu0 0.0
    %1480 = vmatpush1.msra.mxu0 0.0
    %1481 = vmatprep.subr.mxu0 0.0
    %1482 = vmatpush1.msra.mxu0 0.0
    %1483 = vmatprep.subr.mxu0 0.0
    %1484 = vmatpush1.msra.mxu0 0.0
    %1485 = vmatprep.subr.mxu0 0.0
    %1486 = vmatpush1.msra.mxu0 0.0
    %1487 = vmatprep.subr.mxu0 0.0
    %1488 = vmatpush1.msra.mxu0 0.0
    %1489 = vmatprep.subr.mxu0 0.0
    %1490 = vmatpush1.msra.mxu0 0.0
    %1491 = vmatprep.subr.mxu0 0.0
    %1492 = vmatpush1.msra.mxu0 0.0
    %1493 = vmatprep.subr.mxu0 0.0
    %1494 = vmatpush1.msra.mxu0 0.0
    %1495 = vmatprep.subr.mxu0 0.0
    %1496 = vmatpush1.msra.mxu0 0.0
    %1497 = vmatprep.subr.mxu0 0.0
    %1498 = vmatpush1.msra.mxu0 0.0
    %1499 = vmatprep.subr.mxu0 0.0
    %1500 = vmatpush1.msra.mxu0 0.0
    %1501 = vmatprep.subr.mxu0 0.0
    %1502 = vmatpush1.msra.mxu0 0.0
    %1503 = vmatprep.subr.mxu0 0.0
    %1504 = vmatpush1.msra.mxu0 0.0
    %1505 = vmatprep.subr.mxu0 0.0
    %1506 = vmatpush1.msra.mxu0 0.0
    %1507 = vmatprep.subr.mxu0 0.0
    %1508 = vmatpush1.msra.mxu0 0.0
    %1509 = vmatprep.subr.mxu0 0.0
    %1510 = vmatpush1.msra.mxu0 0.0
    %1511 = vmatprep.subr.mxu0 0.0
    %1512 = vmatpush1.msra.mxu0 0.0
    %1513 = vmatprep.subr.mxu0 0.0
    %1514 = vmatpush1.msra.mxu0 0.0
    %1515 = vmatprep.subr.mxu0 0.0
    %1516 = vmatpush1.msra.mxu0 0.0
    %1517 = vmatprep.subr.mxu0 0.0
    %1518 = vmatpush1.msra.mxu0 0.0
    %1519 = vmatprep.subr.mxu0 0.0
    %1520 = vmatpush1.msra.mxu0 0.0
    %1521 = vmatprep.subr.mxu0 0.0
    %1522 = vmatpush1.msra.mxu0 0.0
    %1523 = vmatprep.subr.mxu0 0.0
    %1524 = vmatpush1.msra.mxu0 0.0
    %1525 = vmatprep.subr.mxu0 0.0
    %1526 = vmatpush1.msra.mxu0 0.0
    %1527 = vmatprep.subr.mxu0 0.0
    %1528 = vmatpush1.msra.mxu0 0.0
    %1529 = vmatprep.subr.mxu0 0.0
    %1530 = vmatpush1.msra.mxu0 0.0
    %1531 = vmatprep.subr.mxu0 0.0
    %1532 = vmatpush1.msra.mxu0 0.0
    %1533 = vmatprep.subr.mxu0 0.0
    %1534 = vmatpush1.msra.mxu0 0.0
    %1535 = vmatprep.subr.mxu0 0.0
    %1536 = vmatpush1.msra.mxu0 0.0
    %1537 = vmatprep.subr.mxu0 0.0
    %1538 = vmatpush1.msra.mxu0 0.0
    %1539 = vmatprep.subr.mxu0 0.0
    %1540 = vmatpush1.msra.mxu0 0.0
    %1541 = vmatprep.mubr.f32.mxu0 0.0
    %1542 = vmatmul.mubr.f32.gmra.mrb[0].mxu0 %v1475
    %v1543 = vpop.f32.mrb[0].mxu0
    %v1544 = vadd.f32 0.0, %v1543
    %v1545 = vpop.f32.mrb[0].mxu0
    %1546 = vdwg.mxu0
    %1548 = vrot.lane.b32.xlu0 %v1196, 8
    %v1549 = vpop.permute.xlu0 %1548
    %1552 = vrot.lane.b32.xlu0 %v1370, 16
    %v1553 = vpop.permute.xlu0 %1552
    %1556 = vrot.lane.b32.xlu0 %v1544, 24
    %v1557 = vpop.permute.xlu0 %1556
    %v1559 = vsel %vm141, %v1022, %v1549
    %v1560 = vsel %vm848, %v1559, %v1553
    %v1561 = vsel %vm850, %v1560, %v1557
    %v1563 = vrot.slane %v1561, 7
    %vm1565 = vcmask 1040384
    %v1566 = vsel %vm1565, %v851, %v1563
    %vm1567 = vcmask 254976
    %1568 = vst.msk [vmem:[#allocation7] sm:$0x3] %vm1567, %v1566
    // Predicated region
    $region22: #{tpu_custom_call.1} parent=1 // pred_check
      _
    $region23: #{tpu_custom_call.1} parent=1 // pred_check_branch
      %1570 = sbr.rel (0) target = $region25
    $region24: #{tpu_custom_call.1} parent=1 // pred_region
      %s1572 = ssub.s32 32, 32
      %1573 = vsyncadd [#allocation4], %s1572
      %s1575 = sshll.u32 [#allocation7], 4
      %s1576 = int_to_ptr.vmem [resolvable:$true] %s1575
      %1578 = dma.vmem_to_hbm [thread:$0]  %s1576, 32, %s3, [#allocation4]
    $region25: #{tpu_custom_call.1} parent=1 // pred_fallthru
      _
    // Predicated region
    $region26: #{tpu_custom_call.1} parent=1 // pred_check
      _
    $region27: #{tpu_custom_call.1} parent=1 // pred_check_branch
      %1580 = sbr.rel (0) target = $region29
    $region28: #{tpu_custom_call.1} parent=1 // pred_region
      %1581 = dma.done [#allocation4], 32
    $region29: #{tpu_custom_call.1} parent=1 // pred_fallthru
      _
    %1582 = vsyncpa [#allocation3], 1
    %1583 = vsyncpa [#allocation6], 1
    %1584 = vsyncpa [#allocation4], 1

</llo_original>
